<compile_context>
chip_gen: v5e
topology: v5e:2x2
jax: 0.10.0
libtpu: 0.0.40
codegen_flags: <defaults>
</compile_context>

<pallas_src>
import math

import jax
import jax.numpy as jnp
import numpy as np
from jax import lax
from jax.experimental import pallas as pl
from jax.experimental.pallas import tpu as pltpu

# ---------------- model hyper-parameters (small, consistent with the module) ---
B = 2            # batch
S = 8            # decoder num_steps
SE = 8           # encoder seq len
H = 32           # num_hiddens (= key/query/value size, ffn_num_input, norm_shape)
NH = 4           # num_heads
DH = H // NH     # per-head dim
F = 64           # ffn_num_hiddens
EPS = 1e-5       # LayerNorm eps (PyTorch default)
MASK_VAL = -1e6  # d2l sequence_mask fill value


# ------------------------------- wrapper + kernel --------------------------------
def decoder_block(x, enc_outputs, enc_valid_lens, params, *, num_heads=NH):
    """Returns (block_output, new_key_values) — mirrors (addnorm3(...), state) with
    state[2][i] updated to key_values (= X, since the cache entry was None)."""
    Bx, Sx, Hx = x.shape
    _, SEx, _ = enc_outputs.shape
    nh = num_heads
    dh = Hx // nh
    BS, BSE = Bx * Sx, Bx * SEx

    (wq1, wk1, wv1, wo1, g1, b1,
     wq2, wk2, wv2, wo2, g2, b2,
     wf1, bf1, wf2, bf2, g3, b3) = params
    Fx = wf1.shape[1]
    scale = 1.0 / math.sqrt(dh)
    f32 = jnp.float32

    # ---- lane-dense weight slab (Hx, 8*Hx): [Wqkv1*s | Wo1 | Wqkv2*s | Wo2] -------
    wqkv1 = jnp.concatenate([wq1 * scale, wk1, wv1], axis=1)   # (H, 3H)
    wqkv2 = jnp.concatenate([wq2 * scale, wk2, wv2], axis=1)   # (H, 3H)
    w_all = jnp.concatenate([wqkv1, wo1, wqkv2, wo2], axis=1).astype(f32)  # (H, 8H)

    # ---- small-vector slab (8, max(H,F)): [g1,b1,g2,b2,g3,b3,bf2,bf1] -------------
    Wv = max(Hx, Fx)

    def padv(v):
        v = v.reshape(1, -1).astype(f32)
        return jnp.pad(v, ((0, 0), (0, Wv - v.shape[1])))

    vecs = jnp.concatenate([padv(g1), padv(b1), padv(g2), padv(b2),
                            padv(g3), padv(b3), padv(bf2), padv(bf1)], axis=0)

    # ---- precomputed block-diagonal keep-masks (wrapper-side, free XLA ops) -------
    rs = jnp.arange(BS, dtype=jnp.int32)[:, None]
    cs = jnp.arange(BS, dtype=jnp.int32)[None, :]
    causal_keep = ((rs // Sx) == (cs // Sx)) & (cs <= rs)          # (BS, BS)

    col_e = jnp.arange(BSE, dtype=jnp.int32)
    vl = jnp.asarray(enc_valid_lens, jnp.int32)
    thr = vl[col_e // SEx]                                          # (BSE,)
    enc_keep = ((rs // Sx) == (col_e[None, :] // SEx)) & \
               ((col_e[None, :] % SEx) < thr[None, :])              # (BS, BSE)

    # pack activations + masks into one slab -> one DMA stream, no scalar prefetch
    xm = jnp.concatenate([x.reshape(BS, Hx).astype(f32),
                          causal_keep.astype(f32),
                          enc_keep.astype(f32)], axis=1)            # (BS, H+BS+BSE)
    enc2d = enc_outputs.reshape(BSE, Hx).astype(f32)
    wf1f = wf1.astype(f32)
    wf2f = wf2.astype(f32)

    # ---- kernel ------------------------------------------------------------------
    def kernel(xm_ref, enc_ref, w_ref, wf1_ref, wf2_ref, vecs_ref, o_ref):
        xm_v = xm_ref[...]                        # (BS, H+BS+BSE)
        xx = xm_v[:, :Hx]                         # (BS, H)
        keep_self = xm_v[:, Hx:Hx + BS] > 0.5     # (BS, BS) bool
        keep_enc = xm_v[:, Hx + BS:] > 0.5        # (BS, BSE) bool
        enc = enc_ref[...]                        # (BSE, H)
        w = w_ref[...]                            # (H, 8H)
        vv = vecs_ref[...]                        # (8, max(H,F))

        def layer_norm(z, g, b_):
            mu = jnp.mean(z, axis=-1, keepdims=True)
            var = jnp.mean((z - mu) ** 2, axis=-1, keepdims=True)
            return (z - mu) * lax.rsqrt(var + EPS) * g + b_

        def mha(q_in, kv_in, wqkv, wo, keep, fuse_qkv):
            # wqkv: (H, 3H) with the 1/sqrt(dh) scale folded into the Q columns.
            if fuse_qkv:        # self-attention: one (BS,H)@(H,3H) matmul
                qkv = jnp.dot(q_in, wqkv, preferred_element_type=jnp.float32)
                q, k, v = qkv[:, :Hx], qkv[:, Hx:2 * Hx], qkv[:, 2 * Hx:]
            else:               # cross-attention: Q and KV have different inputs
                q = jnp.dot(q_in, wqkv[:, :Hx], preferred_element_type=jnp.float32)
                kv = jnp.dot(kv_in, wqkv[:, Hx:], preferred_element_type=jnp.float32)
                k, v = kv[:, :Hx], kv[:, Hx:]
            heads = []
            for h in range(nh):                   # static per-head lane slices
                sl = slice(h * dh, (h + 1) * dh)
                s = jnp.einsum('qd,kd->qk', q[:, sl], k[:, sl],
                               preferred_element_type=jnp.float32)   # (Sq, Sk)
                s = jnp.where(keep, s, MASK_VAL)
                p = jnp.exp(s - jnp.max(s, axis=-1, keepdims=True))
                p = p / jnp.sum(p, axis=-1, keepdims=True)           # exact division
                heads.append(jnp.dot(p, v[:, sl],
                                     preferred_element_type=jnp.float32))  # (Sq, dh)
            pv = jnp.concatenate(heads, axis=-1)                     # (Sq, H)
            return jnp.dot(pv, wo, preferred_element_type=jnp.float32)

        # ---- attention1 (masked self-attn; key_values == X) + AddNorm1 ----------
        x2 = mha(xx, xx, w[:, 0:3 * Hx], w[:, 3 * Hx:4 * Hx], keep_self, True)
        y = layer_norm(xx + x2, vv[0:1, :Hx], vv[1:2, :Hx])

        # ---- attention2 (cross-attn over encoder outputs) + AddNorm2 -------------
        y2 = mha(y, enc, w[:, 4 * Hx:7 * Hx], w[:, 7 * Hx:8 * Hx], keep_enc, False)
        z = layer_norm(y + y2, vv[2:3, :Hx], vv[3:4, :Hx])

        # ---- position-wise FFN + AddNorm3 ----------------------------------------
        h1 = jnp.maximum(
            jnp.dot(z, wf1_ref[...], preferred_element_type=jnp.float32)
            + vv[7:8, :Fx], 0.0)
        ffn = jnp.dot(h1, wf2_ref[...], preferred_element_type=jnp.float32) \
            + vv[6:7, :Hx]
        out = layer_norm(z + ffn, vv[4:5, :Hx], vv[5:6, :Hx])

        o_ref[...] = out.astype(o_ref.dtype)

    # ---- pallas_call --------------------------------------------------------------
    inputs = (xm, enc2d, w_all, wf1f, wf2f, vecs)

    def full_spec(arr):
        nd = arr.ndim
        return pl.BlockSpec(arr.shape, lambda i, _nd=nd: (0,) * _nd)

    flops = 2 * (
        BS * Hx * 3 * Hx                 # self-attn fused QKV projection
        + 2 * nh * BS * BS * dh          # self-attn scores + PV
        + BS * Hx * Hx                   # self-attn output projection
        + BS * Hx * Hx                   # cross-attn Q projection
        + BSE * Hx * 2 * Hx              # cross-attn fused KV projection
        + 2 * nh * BS * BSE * dh         # cross-attn scores + PV
        + BS * Hx * Hx                   # cross-attn output projection
        + BS * Hx * Fx + BS * Fx * Hx    # FFN
    )
    transcendentals = nh * BS * (BS + BSE) + 3 * BS
    bytes_accessed = (sum(int(np.prod(a.shape)) * a.dtype.itemsize for a in inputs)
                      + BS * Hx * 4)

    out2d = pl.pallas_call(
        kernel,
        out_shape=jax.ShapeDtypeStruct((BS, Hx), jnp.float32),
        grid_spec=pltpu.PrefetchScalarGridSpec(
            num_scalar_prefetch=0,
            grid=(1,),                               # single invocation (toy size)
            in_specs=[full_spec(a) for a in inputs],
            out_specs=pl.BlockSpec((BS, Hx), lambda i: (0, 0)),
        ),
        compiler_params=pltpu.CompilerParams(
            dimension_semantics=("arbitrary",)),
        cost_estimate=pl.CostEstimate(
            flops=flops, transcendentals=transcendentals,
            bytes_accessed=bytes_accessed),
    )(*inputs)

    out = out2d.reshape(Bx, Sx, Hx)
    key_values = x  # state[2][i] = key_values (cache was None -> key_values == X)
    return out, key_values


# ------------------------------- reference (pure JAX) ---------------------------
def reference(x, enc, valid_lens, params):
    (wq1, wk1, wv1, wo1, g1, b1,
     wq2, wk2, wv2, wo2, g2, b2,
     wf1, bf1, wf2, bf2, g3, b3) = params

    def ln(z, g, bb):
        mu = z.mean(-1, keepdims=True)
        var = ((z - mu) ** 2).mean(-1, keepdims=True)
        return (z - mu) / jnp.sqrt(var + EPS) * g + bb

    def mha(xq, xkv, wq, wk, wv, wo, mask):
        q = (xq @ wq).reshape(xq.shape[0], xq.shape[1], NH, DH)
        k = (xkv @ wk).reshape(xkv.shape[0], xkv.shape[1], NH, DH)
        v = (xkv @ wv).reshape(xkv.shape[0], xkv.shape[1], NH, DH)
        s = jnp.einsum("bqhd,bkhd->bhqk", q, k) / math.sqrt(DH)
        s = jnp.where(mask[:, None], s, MASK_VAL)
        p = jax.nn.softmax(s, axis=-1)
        o = jnp.einsum("bhqk,bkhd->bqhd", p, v).reshape(xq.shape[0], xq.shape[1], H)
        return o @ wo

    row = jnp.arange(S)[:, None]
    causal = (jnp.arange(S)[None, :] <= row)[None].repeat(B, 0)
    x2 = mha(x, x, wq1, wk1, wv1, wo1, causal)
    y = ln(x + x2, g1, b1)
    enc_mask = (jnp.arange(SE)[None, None, :] < valid_lens[:, None, None]).repeat(S, 1)
    y2 = mha(y, enc, wq2, wk2, wv2, wo2, enc_mask)
    z = ln(y + y2, g2, b2)
    ffn = jnp.maximum(z @ wf1 + bf1, 0.0) @ wf2 + bf2
    return ln(z + ffn, g3, b3)


# ------------------------------- main --------------------------------------------
if __name__ == "__main__":
    key = jax.random.PRNGKey(0)
    ks = jax.random.split(key, 16)
    w = lambda k, shape: (jax.random.normal(k, shape) * 0.02).astype(jnp.float32)

    params = (
        # attention1 (key_size=query_size=value_size=num_hiddens=H, bias=False)
        w(ks[0], (H, H)), w(ks[1], (H, H)), w(ks[2], (H, H)), w(ks[3], (H, H)),
        jnp.ones((1, H), jnp.float32), jnp.zeros((1, H), jnp.float32),     # addnorm1
        # attention2
        w(ks[4], (H, H)), w(ks[5], (H, H)), w(ks[6], (H, H)), w(ks[7], (H, H)),
        jnp.ones((1, H), jnp.float32), jnp.zeros((1, H), jnp.float32),     # addnorm2
        # FFN
        w(ks[8], (H, F)), jnp.zeros((1, F), jnp.float32),
        w(ks[9], (F, H)), jnp.zeros((1, H), jnp.float32),
        jnp.ones((1, H), jnp.float32), jnp.zeros((1, H), jnp.float32),     # addnorm3
    )

    x = jax.random.normal(ks[10], (B, S, H), jnp.float32)
    enc_outputs = jax.random.normal(ks[11], (B, SE, H), jnp.float32)
    enc_valid_lens = jnp.array([SE, 5], jnp.int32)

    out, new_kv = decoder_block(x, enc_outputs, enc_valid_lens, params)
    out = jax.block_until_ready(out)

    ref = reference(x, enc_outputs, enc_valid_lens, params)
    # Exact softmax division restored (no approx reciprocal).  Tolerance 1e-3
    # covers MXU-vs-XLA f32 matmul accumulation-order / default-precision
    # differences and the (benign) 1/sqrt(dh) fold into the Q weight columns.
    np.testing.assert_allclose(np.asarray(out), np.asarray(ref), rtol=1e-3, atol=1e-3)

    # TODO(synk): dropout is stochastic in training mode; implemented as identity (p=0 / eval).
    # TODO(synk): KV-cache concat (state[2][i] not None) is plain-JAX wrapper glue, not kernelized.
    print("KERNEL_OK")
</pallas_src>

<mosaic_0001>
module attributes {stable_mosaic.version = 11 : i64} {
  func.func @kernel(%arg0: i32, %arg1: memref<16x64xf32, #tpu.memory_space<vmem>>, %arg2: memref<16x32xf32, #tpu.memory_space<vmem>>, %arg3: memref<32x256xf32, #tpu.memory_space<vmem>>, %arg4: memref<32x64xf32, #tpu.memory_space<vmem>>, %arg5: memref<64x32xf32, #tpu.memory_space<vmem>>, %arg6: memref<8x64xf32, #tpu.memory_space<vmem>>, %arg7: memref<16x32xf32, #tpu.memory_space<vmem>>) attributes {dimension_semantics = [#tpu.dimension_semantics<arbitrary>], iteration_bounds = array<i64: 1>, scalar_prefetch = 0 : i64, scratch_operands = 0 : i64, tpu.core_type = #tpu.core_type<tc>, window_params = [{pipeline_mode = #tpu.pipeline_mode<synchronous>, transform_indices = @transform_0, window_bounds = array<i64: 16, 64>}, {pipeline_mode = #tpu.pipeline_mode<synchronous>, transform_indices = @transform_1, window_bounds = array<i64: 16, 32>}, {pipeline_mode = #tpu.pipeline_mode<synchronous>, transform_indices = @transform_2, window_bounds = array<i64: 32, 256>}, {pipeline_mode = #tpu.pipeline_mode<synchronous>, transform_indices = @transform_3, window_bounds = array<i64: 32, 64>}, {pipeline_mode = #tpu.pipeline_mode<synchronous>, transform_indices = @transform_4, window_bounds = array<i64: 64, 32>}, {pipeline_mode = #tpu.pipeline_mode<synchronous>, transform_indices = @transform_5, window_bounds = array<i64: 8, 64>}, {pipeline_mode = #tpu.pipeline_mode<synchronous>, transform_indices = @transform_6, window_bounds = array<i64: 16, 32>}]} {
    %c0 = arith.constant 0 : index
    %c0_0 = arith.constant 0 : index
    %0 = vector.load %arg1[%c0, %c0_0] : memref<16x64xf32, #tpu.memory_space<vmem>>, vector<16x64xf32>
    %1 = vector.extract_strided_slice %0 {offsets = [0, 0], sizes = [16, 32], strides = [1, 1]} : vector<16x64xf32> to vector<16x32xf32>
    %2 = vector.extract_strided_slice %0 {offsets = [0, 32], sizes = [16, 16], strides = [1, 1]} : vector<16x64xf32> to vector<16x16xf32>
    %cst = arith.constant 5.000000e-01 : f32
    %3 = vector.broadcast %cst : f32 to vector<16x16xf32>
    %4 = arith.cmpf ogt, %2, %3 : vector<16x16xf32>
    %5 = vector.extract_strided_slice %0 {offsets = [0, 48], sizes = [16, 16], strides = [1, 1]} : vector<16x64xf32> to vector<16x16xf32>
    %cst_1 = arith.constant 5.000000e-01 : f32
    %6 = vector.broadcast %cst_1 : f32 to vector<16x16xf32>
    %7 = arith.cmpf ogt, %5, %6 : vector<16x16xf32>
    %c0_2 = arith.constant 0 : index
    %c0_3 = arith.constant 0 : index
    %8 = vector.load %arg2[%c0_2, %c0_3] : memref<16x32xf32, #tpu.memory_space<vmem>>, vector<16x32xf32>
    %c0_4 = arith.constant 0 : index
    %c0_5 = arith.constant 0 : index
    %9 = vector.load %arg3[%c0_4, %c0_5] : memref<32x256xf32, #tpu.memory_space<vmem>>, vector<32x256xf32>
    %c0_6 = arith.constant 0 : index
    %c0_7 = arith.constant 0 : index
    %10 = vector.load %arg6[%c0_6, %c0_7] : memref<8x64xf32, #tpu.memory_space<vmem>>, vector<8x64xf32>
    %11 = vector.extract_strided_slice %9 {offsets = [0, 0], sizes = [32, 96], strides = [1, 1]} : vector<32x256xf32> to vector<32x96xf32>
    %12 = vector.extract_strided_slice %9 {offsets = [0, 96], sizes = [32, 32], strides = [1, 1]} : vector<32x256xf32> to vector<32x32xf32>
    %cst_8 = arith.constant dense<0.000000e+00> : vector<16x96xf32>
    %13 = tpu.matmul %1, %11, %cst_8 {dimension_numbers = #tpu.dot_dimension_numbers<[1], [0], [0], [1], [0, 0, 1, 1], [], []>} : vector<16x32xf32>, vector<32x96xf32>, vector<16x96xf32> -> vector<16x96xf32>
    %14 = vector.extract_strided_slice %13 {offsets = [0, 0], sizes = [16, 32], strides = [1, 1]} : vector<16x96xf32> to vector<16x32xf32>
    %15 = vector.extract_strided_slice %13 {offsets = [0, 32], sizes = [16, 32], strides = [1, 1]} : vector<16x96xf32> to vector<16x32xf32>
    %16 = vector.extract_strided_slice %13 {offsets = [0, 64], sizes = [16, 32], strides = [1, 1]} : vector<16x96xf32> to vector<16x32xf32>
    %17 = vector.extract_strided_slice %14 {offsets = [0, 0], sizes = [16, 8], strides = [1, 1]} : vector<16x32xf32> to vector<16x8xf32>
    %18 = vector.extract_strided_slice %15 {offsets = [0, 0], sizes = [16, 8], strides = [1, 1]} : vector<16x32xf32> to vector<16x8xf32>
    "tpu.trace_start"() <{level = 10 : i32, message = "qd,kd->qk"}> : () -> ()
    %cst_9 = arith.constant dense<0.000000e+00> : vector<16x16xf32>
    %19 = tpu.matmul %17, %18, %cst_9 {dimension_numbers = #tpu.dot_dimension_numbers<[1], [1], [0], [0], [0, 0, 1, 0], [], []>} : vector<16x8xf32>, vector<16x8xf32>, vector<16x16xf32> -> vector<16x16xf32>
    %cst_10 = arith.constant -1.000000e+06 : f32
    "tpu.trace_stop"() : () -> ()
    %20 = vector.broadcast %cst_10 : f32 to vector<16x16xf32>
    %21 = arith.select %4, %19, %20 : vector<16x16xi1>, vector<16x16xf32>
    %cst_11 = arith.constant dense<0xFF800000> : vector<16xf32>
    %22 = vector.multi_reduction <maximumf>, %21, %cst_11 [1] : vector<16x16xf32> to vector<16xf32>
    %23 = vector.shape_cast %22 : vector<16xf32> to vector<16x1xf32>
    %24 = vector.broadcast %23 : vector<16x1xf32> to vector<16x16xf32>
    %25 = arith.subf %21, %24 : vector<16x16xf32>
    %26 = math.exp %25 : vector<16x16xf32>
    %cst_12 = arith.constant dense<0.000000e+00> : vector<16xf32>
    %27 = vector.multi_reduction <add>, %26, %cst_12 [1] : vector<16x16xf32> to vector<16xf32>
    %28 = vector.shape_cast %27 : vector<16xf32> to vector<16x1xf32>
    %29 = vector.broadcast %28 : vector<16x1xf32> to vector<16x16xf32>
    %30 = arith.divf %26, %29 : vector<16x16xf32>
    %31 = vector.extract_strided_slice %16 {offsets = [0, 0], sizes = [16, 8], strides = [1, 1]} : vector<16x32xf32> to vector<16x8xf32>
    %cst_13 = arith.constant dense<0.000000e+00> : vector<16x8xf32>
    %32 = tpu.matmul %30, %31, %cst_13 {dimension_numbers = #tpu.dot_dimension_numbers<[1], [0], [0], [1], [0, 0, 1, 1], [], []>} : vector<16x16xf32>, vector<16x8xf32>, vector<16x8xf32> -> vector<16x8xf32>
    %33 = vector.extract_strided_slice %14 {offsets = [0, 8], sizes = [16, 8], strides = [1, 1]} : vector<16x32xf32> to vector<16x8xf32>
    %34 = vector.extract_strided_slice %15 {offsets = [0, 8], sizes = [16, 8], strides = [1, 1]} : vector<16x32xf32> to vector<16x8xf32>
    "tpu.trace_start"() <{level = 10 : i32, message = "qd,kd->qk"}> : () -> ()
    %cst_14 = arith.constant dense<0.000000e+00> : vector<16x16xf32>
    %35 = tpu.matmul %33, %34, %cst_14 {dimension_numbers = #tpu.dot_dimension_numbers<[1], [1], [0], [0], [0, 0, 1, 0], [], []>} : vector<16x8xf32>, vector<16x8xf32>, vector<16x16xf32> -> vector<16x16xf32>
    %cst_15 = arith.constant -1.000000e+06 : f32
    "tpu.trace_stop"() : () -> ()
    %36 = vector.broadcast %cst_15 : f32 to vector<16x16xf32>
    %37 = arith.select %4, %35, %36 : vector<16x16xi1>, vector<16x16xf32>
    %cst_16 = arith.constant dense<0xFF800000> : vector<16xf32>
    %38 = vector.multi_reduction <maximumf>, %37, %cst_16 [1] : vector<16x16xf32> to vector<16xf32>
    %39 = vector.shape_cast %38 : vector<16xf32> to vector<16x1xf32>
    %40 = vector.broadcast %39 : vector<16x1xf32> to vector<16x16xf32>
    %41 = arith.subf %37, %40 : vector<16x16xf32>
    %42 = math.exp %41 : vector<16x16xf32>
    %cst_17 = arith.constant dense<0.000000e+00> : vector<16xf32>
    %43 = vector.multi_reduction <add>, %42, %cst_17 [1] : vector<16x16xf32> to vector<16xf32>
    %44 = vector.shape_cast %43 : vector<16xf32> to vector<16x1xf32>
    %45 = vector.broadcast %44 : vector<16x1xf32> to vector<16x16xf32>
    %46 = arith.divf %42, %45 : vector<16x16xf32>
    %47 = vector.extract_strided_slice %16 {offsets = [0, 8], sizes = [16, 8], strides = [1, 1]} : vector<16x32xf32> to vector<16x8xf32>
    %cst_18 = arith.constant dense<0.000000e+00> : vector<16x8xf32>
    %48 = tpu.matmul %46, %47, %cst_18 {dimension_numbers = #tpu.dot_dimension_numbers<[1], [0], [0], [1], [0, 0, 1, 1], [], []>} : vector<16x16xf32>, vector<16x8xf32>, vector<16x8xf32> -> vector<16x8xf32>
    %49 = vector.extract_strided_slice %14 {offsets = [0, 16], sizes = [16, 8], strides = [1, 1]} : vector<16x32xf32> to vector<16x8xf32>
    %50 = vector.extract_strided_slice %15 {offsets = [0, 16], sizes = [16, 8], strides = [1, 1]} : vector<16x32xf32> to vector<16x8xf32>
    "tpu.trace_start"() <{level = 10 : i32, message = "qd,kd->qk"}> : () -> ()
    %cst_19 = arith.constant dense<0.000000e+00> : vector<16x16xf32>
    %51 = tpu.matmul %49, %50, %cst_19 {dimension_numbers = #tpu.dot_dimension_numbers<[1], [1], [0], [0], [0, 0, 1, 0], [], []>} : vector<16x8xf32>, vector<16x8xf32>, vector<16x16xf32> -> vector<16x16xf32>
    %cst_20 = arith.constant -1.000000e+06 : f32
    "tpu.trace_stop"() : () -> ()
    %52 = vector.broadcast %cst_20 : f32 to vector<16x16xf32>
    %53 = arith.select %4, %51, %52 : vector<16x16xi1>, vector<16x16xf32>
    %cst_21 = arith.constant dense<0xFF800000> : vector<16xf32>
    %54 = vector.multi_reduction <maximumf>, %53, %cst_21 [1] : vector<16x16xf32> to vector<16xf32>
    %55 = vector.shape_cast %54 : vector<16xf32> to vector<16x1xf32>
    %56 = vector.broadcast %55 : vector<16x1xf32> to vector<16x16xf32>
    %57 = arith.subf %53, %56 : vector<16x16xf32>
    %58 = math.exp %57 : vector<16x16xf32>
    %cst_22 = arith.constant dense<0.000000e+00> : vector<16xf32>
    %59 = vector.multi_reduction <add>, %58, %cst_22 [1] : vector<16x16xf32> to vector<16xf32>
    %60 = vector.shape_cast %59 : vector<16xf32> to vector<16x1xf32>
    %61 = vector.broadcast %60 : vector<16x1xf32> to vector<16x16xf32>
    %62 = arith.divf %58, %61 : vector<16x16xf32>
    %63 = vector.extract_strided_slice %16 {offsets = [0, 16], sizes = [16, 8], strides = [1, 1]} : vector<16x32xf32> to vector<16x8xf32>
    %cst_23 = arith.constant dense<0.000000e+00> : vector<16x8xf32>
    %64 = tpu.matmul %62, %63, %cst_23 {dimension_numbers = #tpu.dot_dimension_numbers<[1], [0], [0], [1], [0, 0, 1, 1], [], []>} : vector<16x16xf32>, vector<16x8xf32>, vector<16x8xf32> -> vector<16x8xf32>
    %65 = vector.extract_strided_slice %14 {offsets = [0, 24], sizes = [16, 8], strides = [1, 1]} : vector<16x32xf32> to vector<16x8xf32>
    %66 = vector.extract_strided_slice %15 {offsets = [0, 24], sizes = [16, 8], strides = [1, 1]} : vector<16x32xf32> to vector<16x8xf32>
    "tpu.trace_start"() <{level = 10 : i32, message = "qd,kd->qk"}> : () -> ()
    %cst_24 = arith.constant dense<0.000000e+00> : vector<16x16xf32>
    %67 = tpu.matmul %65, %66, %cst_24 {dimension_numbers = #tpu.dot_dimension_numbers<[1], [1], [0], [0], [0, 0, 1, 0], [], []>} : vector<16x8xf32>, vector<16x8xf32>, vector<16x16xf32> -> vector<16x16xf32>
    %cst_25 = arith.constant -1.000000e+06 : f32
    "tpu.trace_stop"() : () -> ()
    %68 = vector.broadcast %cst_25 : f32 to vector<16x16xf32>
    %69 = arith.select %4, %67, %68 : vector<16x16xi1>, vector<16x16xf32>
    %cst_26 = arith.constant dense<0xFF800000> : vector<16xf32>
    %70 = vector.multi_reduction <maximumf>, %69, %cst_26 [1] : vector<16x16xf32> to vector<16xf32>
    %71 = vector.shape_cast %70 : vector<16xf32> to vector<16x1xf32>
    %72 = vector.broadcast %71 : vector<16x1xf32> to vector<16x16xf32>
    %73 = arith.subf %69, %72 : vector<16x16xf32>
    %74 = math.exp %73 : vector<16x16xf32>
    %cst_27 = arith.constant dense<0.000000e+00> : vector<16xf32>
    %75 = vector.multi_reduction <add>, %74, %cst_27 [1] : vector<16x16xf32> to vector<16xf32>
    %76 = vector.shape_cast %75 : vector<16xf32> to vector<16x1xf32>
    %77 = vector.broadcast %76 : vector<16x1xf32> to vector<16x16xf32>
    %78 = arith.divf %74, %77 : vector<16x16xf32>
    %79 = vector.extract_strided_slice %16 {offsets = [0, 24], sizes = [16, 8], strides = [1, 1]} : vector<16x32xf32> to vector<16x8xf32>
    %cst_28 = arith.constant dense<0.000000e+00> : vector<16x8xf32>
    %80 = tpu.matmul %78, %79, %cst_28 {dimension_numbers = #tpu.dot_dimension_numbers<[1], [0], [0], [1], [0, 0, 1, 1], [], []>} : vector<16x16xf32>, vector<16x8xf32>, vector<16x8xf32> -> vector<16x8xf32>
    %81 = tpu.concatenate %32, %48, %64, %80 in 1 : vector<16x8xf32>, vector<16x8xf32>, vector<16x8xf32>, vector<16x8xf32> -> vector<16x32xf32>
    %cst_29 = arith.constant dense<0.000000e+00> : vector<16x32xf32>
    %82 = tpu.matmul %81, %12, %cst_29 {dimension_numbers = #tpu.dot_dimension_numbers<[1], [0], [0], [1], [0, 0, 1, 1], [], []>} : vector<16x32xf32>, vector<32x32xf32>, vector<16x32xf32> -> vector<16x32xf32>
    %83 = arith.addf %1, %82 : vector<16x32xf32>
    %84 = vector.extract_strided_slice %10 {offsets = [0, 0], sizes = [1, 32], strides = [1, 1]} : vector<8x64xf32> to vector<1x32xf32>
    %85 = vector.extract_strided_slice %10 {offsets = [1, 0], sizes = [1, 32], strides = [1, 1]} : vector<8x64xf32> to vector<1x32xf32>
    %cst_30 = arith.constant dense<0.000000e+00> : vector<16xf32>
    %86 = vector.multi_reduction <add>, %83, %cst_30 [1] : vector<16x32xf32> to vector<16xf32>
    %87 = vector.shape_cast %86 : vector<16xf32> to vector<16x1xf32>
    %cst_31 = arith.constant 3.200000e+01 : f32
    %88 = vector.broadcast %cst_31 : f32 to vector<16x1xf32>
    %89 = arith.divf %87, %88 : vector<16x1xf32>
    %90 = vector.broadcast %89 : vector<16x1xf32> to vector<16x32xf32>
    %91 = arith.subf %83, %90 : vector<16x32xf32>
    %92 = arith.mulf %91, %91 : vector<16x32xf32>
    %cst_32 = arith.constant dense<0.000000e+00> : vector<16xf32>
    %93 = vector.multi_reduction <add>, %92, %cst_32 [1] : vector<16x32xf32> to vector<16xf32>
    %94 = vector.shape_cast %93 : vector<16xf32> to vector<16x1xf32>
    %cst_33 = arith.constant 3.200000e+01 : f32
    %95 = vector.broadcast %cst_33 : f32 to vector<16x1xf32>
    %96 = arith.divf %94, %95 : vector<16x1xf32>
    %97 = vector.broadcast %89 : vector<16x1xf32> to vector<16x32xf32>
    %98 = arith.subf %83, %97 : vector<16x32xf32>
    %cst_34 = arith.constant 9.99999974E-6 : f32
    %99 = vector.broadcast %cst_34 : f32 to vector<16x1xf32>
    %100 = arith.addf %96, %99 : vector<16x1xf32>
    %101 = math.rsqrt %100 : vector<16x1xf32>
    %102 = vector.broadcast %101 : vector<16x1xf32> to vector<16x32xf32>
    %103 = arith.mulf %98, %102 : vector<16x32xf32>
    %104 = vector.broadcast %84 : vector<1x32xf32> to vector<16x32xf32>
    %105 = arith.mulf %103, %104 : vector<16x32xf32>
    %106 = vector.broadcast %85 : vector<1x32xf32> to vector<16x32xf32>
    %107 = arith.addf %105, %106 : vector<16x32xf32>
    %108 = vector.extract_strided_slice %9 {offsets = [0, 128], sizes = [32, 96], strides = [1, 1]} : vector<32x256xf32> to vector<32x96xf32>
    %109 = vector.extract_strided_slice %9 {offsets = [0, 224], sizes = [32, 32], strides = [1, 1]} : vector<32x256xf32> to vector<32x32xf32>
    %110 = vector.extract_strided_slice %108 {offsets = [0, 0], sizes = [32, 32], strides = [1, 1]} : vector<32x96xf32> to vector<32x32xf32>
    %cst_35 = arith.constant dense<0.000000e+00> : vector<16x32xf32>
    %111 = tpu.matmul %107, %110, %cst_35 {dimension_numbers = #tpu.dot_dimension_numbers<[1], [0], [0], [1], [0, 0, 1, 1], [], []>} : vector<16x32xf32>, vector<32x32xf32>, vector<16x32xf32> -> vector<16x32xf32>
    %112 = vector.extract_strided_slice %108 {offsets = [0, 32], sizes = [32, 64], strides = [1, 1]} : vector<32x96xf32> to vector<32x64xf32>
    %cst_36 = arith.constant dense<0.000000e+00> : vector<16x64xf32>
    %113 = tpu.matmul %8, %112, %cst_36 {dimension_numbers = #tpu.dot_dimension_numbers<[1], [0], [0], [1], [0, 0, 1, 1], [], []>} : vector<16x32xf32>, vector<32x64xf32>, vector<16x64xf32> -> vector<16x64xf32>
    %114 = vector.extract_strided_slice %113 {offsets = [0, 0], sizes = [16, 32], strides = [1, 1]} : vector<16x64xf32> to vector<16x32xf32>
    %115 = vector.extract_strided_slice %113 {offsets = [0, 32], sizes = [16, 32], strides = [1, 1]} : vector<16x64xf32> to vector<16x32xf32>
    %116 = vector.extract_strided_slice %111 {offsets = [0, 0], sizes = [16, 8], strides = [1, 1]} : vector<16x32xf32> to vector<16x8xf32>
    %117 = vector.extract_strided_slice %114 {offsets = [0, 0], sizes = [16, 8], strides = [1, 1]} : vector<16x32xf32> to vector<16x8xf32>
    "tpu.trace_start"() <{level = 10 : i32, message = "qd,kd->qk"}> : () -> ()
    %cst_37 = arith.constant dense<0.000000e+00> : vector<16x16xf32>
    %118 = tpu.matmul %116, %117, %cst_37 {dimension_numbers = #tpu.dot_dimension_numbers<[1], [1], [0], [0], [0, 0, 1, 0], [], []>} : vector<16x8xf32>, vector<16x8xf32>, vector<16x16xf32> -> vector<16x16xf32>
    %cst_38 = arith.constant -1.000000e+06 : f32
    "tpu.trace_stop"() : () -> ()
    %119 = vector.broadcast %cst_38 : f32 to vector<16x16xf32>
    %120 = arith.select %7, %118, %119 : vector<16x16xi1>, vector<16x16xf32>
    %cst_39 = arith.constant dense<0xFF800000> : vector<16xf32>
    %121 = vector.multi_reduction <maximumf>, %120, %cst_39 [1] : vector<16x16xf32> to vector<16xf32>
    %122 = vector.shape_cast %121 : vector<16xf32> to vector<16x1xf32>
    %123 = vector.broadcast %122 : vector<16x1xf32> to vector<16x16xf32>
    %124 = arith.subf %120, %123 : vector<16x16xf32>
    %125 = math.exp %124 : vector<16x16xf32>
    %cst_40 = arith.constant dense<0.000000e+00> : vector<16xf32>
    %126 = vector.multi_reduction <add>, %125, %cst_40 [1] : vector<16x16xf32> to vector<16xf32>
    %127 = vector.shape_cast %126 : vector<16xf32> to vector<16x1xf32>
    %128 = vector.broadcast %127 : vector<16x1xf32> to vector<16x16xf32>
    %129 = arith.divf %125, %128 : vector<16x16xf32>
    %130 = vector.extract_strided_slice %115 {offsets = [0, 0], sizes = [16, 8], strides = [1, 1]} : vector<16x32xf32> to vector<16x8xf32>
    %cst_41 = arith.constant dense<0.000000e+00> : vector<16x8xf32>
    %131 = tpu.matmul %129, %130, %cst_41 {dimension_numbers = #tpu.dot_dimension_numbers<[1], [0], [0], [1], [0, 0, 1, 1], [], []>} : vector<16x16xf32>, vector<16x8xf32>, vector<16x8xf32> -> vector<16x8xf32>
    %132 = vector.extract_strided_slice %111 {offsets = [0, 8], sizes = [16, 8], strides = [1, 1]} : vector<16x32xf32> to vector<16x8xf32>
    %133 = vector.extract_strided_slice %114 {offsets = [0, 8], sizes = [16, 8], strides = [1, 1]} : vector<16x32xf32> to vector<16x8xf32>
    "tpu.trace_start"() <{level = 10 : i32, message = "qd,kd->qk"}> : () -> ()
    %cst_42 = arith.constant dense<0.000000e+00> : vector<16x16xf32>
    %134 = tpu.matmul %132, %133, %cst_42 {dimension_numbers = #tpu.dot_dimension_numbers<[1], [1], [0], [0], [0, 0, 1, 0], [], []>} : vector<16x8xf32>, vector<16x8xf32>, vector<16x16xf32> -> vector<16x16xf32>
    %cst_43 = arith.constant -1.000000e+06 : f32
    "tpu.trace_stop"() : () -> ()
    %135 = vector.broadcast %cst_43 : f32 to vector<16x16xf32>
    %136 = arith.select %7, %134, %135 : vector<16x16xi1>, vector<16x16xf32>
    %cst_44 = arith.constant dense<0xFF800000> : vector<16xf32>
    %137 = vector.multi_reduction <maximumf>, %136, %cst_44 [1] : vector<16x16xf32> to vector<16xf32>
    %138 = vector.shape_cast %137 : vector<16xf32> to vector<16x1xf32>
    %139 = vector.broadcast %138 : vector<16x1xf32> to vector<16x16xf32>
    %140 = arith.subf %136, %139 : vector<16x16xf32>
    %141 = math.exp %140 : vector<16x16xf32>
    %cst_45 = arith.constant dense<0.000000e+00> : vector<16xf32>
    %142 = vector.multi_reduction <add>, %141, %cst_45 [1] : vector<16x16xf32> to vector<16xf32>
    %143 = vector.shape_cast %142 : vector<16xf32> to vector<16x1xf32>
    %144 = vector.broadcast %143 : vector<16x1xf32> to vector<16x16xf32>
    %145 = arith.divf %141, %144 : vector<16x16xf32>
    %146 = vector.extract_strided_slice %115 {offsets = [0, 8], sizes = [16, 8], strides = [1, 1]} : vector<16x32xf32> to vector<16x8xf32>
    %cst_46 = arith.constant dense<0.000000e+00> : vector<16x8xf32>
    %147 = tpu.matmul %145, %146, %cst_46 {dimension_numbers = #tpu.dot_dimension_numbers<[1], [0], [0], [1], [0, 0, 1, 1], [], []>} : vector<16x16xf32>, vector<16x8xf32>, vector<16x8xf32> -> vector<16x8xf32>
    %148 = vector.extract_strided_slice %111 {offsets = [0, 16], sizes = [16, 8], strides = [1, 1]} : vector<16x32xf32> to vector<16x8xf32>
    %149 = vector.extract_strided_slice %114 {offsets = [0, 16], sizes = [16, 8], strides = [1, 1]} : vector<16x32xf32> to vector<16x8xf32>
    "tpu.trace_start"() <{level = 10 : i32, message = "qd,kd->qk"}> : () -> ()
    %cst_47 = arith.constant dense<0.000000e+00> : vector<16x16xf32>
    %150 = tpu.matmul %148, %149, %cst_47 {dimension_numbers = #tpu.dot_dimension_numbers<[1], [1], [0], [0], [0, 0, 1, 0], [], []>} : vector<16x8xf32>, vector<16x8xf32>, vector<16x16xf32> -> vector<16x16xf32>
    %cst_48 = arith.constant -1.000000e+06 : f32
    "tpu.trace_stop"() : () -> ()
    %151 = vector.broadcast %cst_48 : f32 to vector<16x16xf32>
    %152 = arith.select %7, %150, %151 : vector<16x16xi1>, vector<16x16xf32>
    %cst_49 = arith.constant dense<0xFF800000> : vector<16xf32>
    %153 = vector.multi_reduction <maximumf>, %152, %cst_49 [1] : vector<16x16xf32> to vector<16xf32>
    %154 = vector.shape_cast %153 : vector<16xf32> to vector<16x1xf32>
    %155 = vector.broadcast %154 : vector<16x1xf32> to vector<16x16xf32>
    %156 = arith.subf %152, %155 : vector<16x16xf32>
    %157 = math.exp %156 : vector<16x16xf32>
    %cst_50 = arith.constant dense<0.000000e+00> : vector<16xf32>
    %158 = vector.multi_reduction <add>, %157, %cst_50 [1] : vector<16x16xf32> to vector<16xf32>
    %159 = vector.shape_cast %158 : vector<16xf32> to vector<16x1xf32>
    %160 = vector.broadcast %159 : vector<16x1xf32> to vector<16x16xf32>
    %161 = arith.divf %157, %160 : vector<16x16xf32>
    %162 = vector.extract_strided_slice %115 {offsets = [0, 16], sizes = [16, 8], strides = [1, 1]} : vector<16x32xf32> to vector<16x8xf32>
    %cst_51 = arith.constant dense<0.000000e+00> : vector<16x8xf32>
    %163 = tpu.matmul %161, %162, %cst_51 {dimension_numbers = #tpu.dot_dimension_numbers<[1], [0], [0], [1], [0, 0, 1, 1], [], []>} : vector<16x16xf32>, vector<16x8xf32>, vector<16x8xf32> -> vector<16x8xf32>
    %164 = vector.extract_strided_slice %111 {offsets = [0, 24], sizes = [16, 8], strides = [1, 1]} : vector<16x32xf32> to vector<16x8xf32>
    %165 = vector.extract_strided_slice %114 {offsets = [0, 24], sizes = [16, 8], strides = [1, 1]} : vector<16x32xf32> to vector<16x8xf32>
    "tpu.trace_start"() <{level = 10 : i32, message = "qd,kd->qk"}> : () -> ()
    %cst_52 = arith.constant dense<0.000000e+00> : vector<16x16xf32>
    %166 = tpu.matmul %164, %165, %cst_52 {dimension_numbers = #tpu.dot_dimension_numbers<[1], [1], [0], [0], [0, 0, 1, 0], [], []>} : vector<16x8xf32>, vector<16x8xf32>, vector<16x16xf32> -> vector<16x16xf32>
    %cst_53 = arith.constant -1.000000e+06 : f32
    "tpu.trace_stop"() : () -> ()
    %167 = vector.broadcast %cst_53 : f32 to vector<16x16xf32>
    %168 = arith.select %7, %166, %167 : vector<16x16xi1>, vector<16x16xf32>
    %cst_54 = arith.constant dense<0xFF800000> : vector<16xf32>
    %169 = vector.multi_reduction <maximumf>, %168, %cst_54 [1] : vector<16x16xf32> to vector<16xf32>
    %170 = vector.shape_cast %169 : vector<16xf32> to vector<16x1xf32>
    %171 = vector.broadcast %170 : vector<16x1xf32> to vector<16x16xf32>
    %172 = arith.subf %168, %171 : vector<16x16xf32>
    %173 = math.exp %172 : vector<16x16xf32>
    %cst_55 = arith.constant dense<0.000000e+00> : vector<16xf32>
    %174 = vector.multi_reduction <add>, %173, %cst_55 [1] : vector<16x16xf32> to vector<16xf32>
    %175 = vector.shape_cast %174 : vector<16xf32> to vector<16x1xf32>
    %176 = vector.broadcast %175 : vector<16x1xf32> to vector<16x16xf32>
    %177 = arith.divf %173, %176 : vector<16x16xf32>
    %178 = vector.extract_strided_slice %115 {offsets = [0, 24], sizes = [16, 8], strides = [1, 1]} : vector<16x32xf32> to vector<16x8xf32>
    %cst_56 = arith.constant dense<0.000000e+00> : vector<16x8xf32>
    %179 = tpu.matmul %177, %178, %cst_56 {dimension_numbers = #tpu.dot_dimension_numbers<[1], [0], [0], [1], [0, 0, 1, 1], [], []>} : vector<16x16xf32>, vector<16x8xf32>, vector<16x8xf32> -> vector<16x8xf32>
    %180 = tpu.concatenate %131, %147, %163, %179 in 1 : vector<16x8xf32>, vector<16x8xf32>, vector<16x8xf32>, vector<16x8xf32> -> vector<16x32xf32>
    %cst_57 = arith.constant dense<0.000000e+00> : vector<16x32xf32>
    %181 = tpu.matmul %180, %109, %cst_57 {dimension_numbers = #tpu.dot_dimension_numbers<[1], [0], [0], [1], [0, 0, 1, 1], [], []>} : vector<16x32xf32>, vector<32x32xf32>, vector<16x32xf32> -> vector<16x32xf32>
    %182 = arith.addf %107, %181 : vector<16x32xf32>
    %183 = vector.extract_strided_slice %10 {offsets = [2, 0], sizes = [1, 32], strides = [1, 1]} : vector<8x64xf32> to vector<1x32xf32>
    %184 = vector.extract_strided_slice %10 {offsets = [3, 0], sizes = [1, 32], strides = [1, 1]} : vector<8x64xf32> to vector<1x32xf32>
    %cst_58 = arith.constant dense<0.000000e+00> : vector<16xf32>
    %185 = vector.multi_reduction <add>, %182, %cst_58 [1] : vector<16x32xf32> to vector<16xf32>
    %186 = vector.shape_cast %185 : vector<16xf32> to vector<16x1xf32>
    %cst_59 = arith.constant 3.200000e+01 : f32
    %187 = vector.broadcast %cst_59 : f32 to vector<16x1xf32>
    %188 = arith.divf %186, %187 : vector<16x1xf32>
    %189 = vector.broadcast %188 : vector<16x1xf32> to vector<16x32xf32>
    %190 = arith.subf %182, %189 : vector<16x32xf32>
    %191 = arith.mulf %190, %190 : vector<16x32xf32>
    %cst_60 = arith.constant dense<0.000000e+00> : vector<16xf32>
    %192 = vector.multi_reduction <add>, %191, %cst_60 [1] : vector<16x32xf32> to vector<16xf32>
    %193 = vector.shape_cast %192 : vector<16xf32> to vector<16x1xf32>
    %cst_61 = arith.constant 3.200000e+01 : f32
    %194 = vector.broadcast %cst_61 : f32 to vector<16x1xf32>
    %195 = arith.divf %193, %194 : vector<16x1xf32>
    %196 = vector.broadcast %188 : vector<16x1xf32> to vector<16x32xf32>
    %197 = arith.subf %182, %196 : vector<16x32xf32>
    %cst_62 = arith.constant 9.99999974E-6 : f32
    %198 = vector.broadcast %cst_62 : f32 to vector<16x1xf32>
    %199 = arith.addf %195, %198 : vector<16x1xf32>
    %200 = math.rsqrt %199 : vector<16x1xf32>
    %201 = vector.broadcast %200 : vector<16x1xf32> to vector<16x32xf32>
    %202 = arith.mulf %197, %201 : vector<16x32xf32>
    %203 = vector.broadcast %183 : vector<1x32xf32> to vector<16x32xf32>
    %204 = arith.mulf %202, %203 : vector<16x32xf32>
    %205 = vector.broadcast %184 : vector<1x32xf32> to vector<16x32xf32>
    %206 = arith.addf %204, %205 : vector<16x32xf32>
    %c0_63 = arith.constant 0 : index
    %c0_64 = arith.constant 0 : index
    %207 = vector.load %arg4[%c0_63, %c0_64] : memref<32x64xf32, #tpu.memory_space<vmem>>, vector<32x64xf32>
    %cst_65 = arith.constant dense<0.000000e+00> : vector<16x64xf32>
    %208 = tpu.matmul %206, %207, %cst_65 {dimension_numbers = #tpu.dot_dimension_numbers<[1], [0], [0], [1], [0, 0, 1, 1], [], []>} : vector<16x32xf32>, vector<32x64xf32>, vector<16x64xf32> -> vector<16x64xf32>
    %209 = vector.extract_strided_slice %10 {offsets = [7, 0], sizes = [1, 64], strides = [1, 1]} : vector<8x64xf32> to vector<1x64xf32>
    %210 = vector.broadcast %209 : vector<1x64xf32> to vector<16x64xf32>
    %211 = arith.addf %208, %210 : vector<16x64xf32>
    %cst_66 = arith.constant 0.000000e+00 : f32
    %212 = vector.broadcast %cst_66 : f32 to vector<16x64xf32>
    %213 = arith.maximumf %211, %212 : vector<16x64xf32>
    %c0_67 = arith.constant 0 : index
    %c0_68 = arith.constant 0 : index
    %214 = vector.load %arg5[%c0_67, %c0_68] : memref<64x32xf32, #tpu.memory_space<vmem>>, vector<64x32xf32>
    %cst_69 = arith.constant dense<0.000000e+00> : vector<16x32xf32>
    %215 = tpu.matmul %213, %214, %cst_69 {dimension_numbers = #tpu.dot_dimension_numbers<[1], [0], [0], [1], [0, 0, 1, 1], [], []>} : vector<16x64xf32>, vector<64x32xf32>, vector<16x32xf32> -> vector<16x32xf32>
    %216 = vector.extract_strided_slice %10 {offsets = [6, 0], sizes = [1, 32], strides = [1, 1]} : vector<8x64xf32> to vector<1x32xf32>
    %217 = vector.broadcast %216 : vector<1x32xf32> to vector<16x32xf32>
    %218 = arith.addf %215, %217 : vector<16x32xf32>
    %219 = arith.addf %206, %218 : vector<16x32xf32>
    %220 = vector.extract_strided_slice %10 {offsets = [4, 0], sizes = [1, 32], strides = [1, 1]} : vector<8x64xf32> to vector<1x32xf32>
    %221 = vector.extract_strided_slice %10 {offsets = [5, 0], sizes = [1, 32], strides = [1, 1]} : vector<8x64xf32> to vector<1x32xf32>
    %cst_70 = arith.constant dense<0.000000e+00> : vector<16xf32>
    %222 = vector.multi_reduction <add>, %219, %cst_70 [1] : vector<16x32xf32> to vector<16xf32>
    %223 = vector.shape_cast %222 : vector<16xf32> to vector<16x1xf32>
    %cst_71 = arith.constant 3.200000e+01 : f32
    %224 = vector.broadcast %cst_71 : f32 to vector<16x1xf32>
    %225 = arith.divf %223, %224 : vector<16x1xf32>
    %226 = vector.broadcast %225 : vector<16x1xf32> to vector<16x32xf32>
    %227 = arith.subf %219, %226 : vector<16x32xf32>
    %228 = arith.mulf %227, %227 : vector<16x32xf32>
    %cst_72 = arith.constant dense<0.000000e+00> : vector<16xf32>
    %229 = vector.multi_reduction <add>, %228, %cst_72 [1] : vector<16x32xf32> to vector<16xf32>
    %230 = vector.shape_cast %229 : vector<16xf32> to vector<16x1xf32>
    %cst_73 = arith.constant 3.200000e+01 : f32
    %231 = vector.broadcast %cst_73 : f32 to vector<16x1xf32>
    %232 = arith.divf %230, %231 : vector<16x1xf32>
    %233 = vector.broadcast %225 : vector<16x1xf32> to vector<16x32xf32>
    %234 = arith.subf %219, %233 : vector<16x32xf32>
    %cst_74 = arith.constant 9.99999974E-6 : f32
    %235 = vector.broadcast %cst_74 : f32 to vector<16x1xf32>
    %236 = arith.addf %232, %235 : vector<16x1xf32>
    %237 = math.rsqrt %236 : vector<16x1xf32>
    %238 = vector.broadcast %237 : vector<16x1xf32> to vector<16x32xf32>
    %239 = arith.mulf %234, %238 : vector<16x32xf32>
    %240 = vector.broadcast %220 : vector<1x32xf32> to vector<16x32xf32>
    %241 = arith.mulf %239, %240 : vector<16x32xf32>
    %242 = vector.broadcast %221 : vector<1x32xf32> to vector<16x32xf32>
    %243 = arith.addf %241, %242 : vector<16x32xf32>
    %c0_75 = arith.constant 0 : index
    %c0_76 = arith.constant 0 : index
    %244 = vector.load %arg7[%c0_75, %c0_76] : memref<16x32xf32, #tpu.memory_space<vmem>>, vector<16x32xf32>
    tpu.vector_store %arg7[%c0_75, %c0_76], %243 {strides = array<i32>} : memref<16x32xf32, #tpu.memory_space<vmem>>, vector<16x32xf32>,
    return
  }
  func.func @transform_0(%arg0: i32) -> (i32, i32) {
    %c0_i32 = arith.constant 0 : i32
    %c0_i32_0 = arith.constant 0 : i32
    %c0_i32_1 = arith.constant 0 : i32
    return %c0_i32, %c0_i32_0 : i32, i32
  }
  func.func @transform_1(%arg0: i32) -> (i32, i32) {
    %c0_i32 = arith.constant 0 : i32
    %c0_i32_0 = arith.constant 0 : i32
    %c0_i32_1 = arith.constant 0 : i32
    return %c0_i32, %c0_i32_0 : i32, i32
  }
  func.func @transform_2(%arg0: i32) -> (i32, i32) {
    %c0_i32 = arith.constant 0 : i32
    %c0_i32_0 = arith.constant 0 : i32
    %c0_i32_1 = arith.constant 0 : i32
    return %c0_i32, %c0_i32_0 : i32, i32
  }
  func.func @transform_3(%arg0: i32) -> (i32, i32) {
    %c0_i32 = arith.constant 0 : i32
    %c0_i32_0 = arith.constant 0 : i32
    %c0_i32_1 = arith.constant 0 : i32
    return %c0_i32, %c0_i32_0 : i32, i32
  }
  func.func @transform_4(%arg0: i32) -> (i32, i32) {
    %c0_i32 = arith.constant 0 : i32
    %c0_i32_0 = arith.constant 0 : i32
    %c0_i32_1 = arith.constant 0 : i32
    return %c0_i32, %c0_i32_0 : i32, i32
  }
  func.func @transform_5(%arg0: i32) -> (i32, i32) {
    %c0_i32 = arith.constant 0 : i32
    %c0_i32_0 = arith.constant 0 : i32
    %c0_i32_1 = arith.constant 0 : i32
    return %c0_i32, %c0_i32_0 : i32, i32
  }
  func.func @transform_6(%arg0: i32) -> (i32, i32) {
    %c0_i32 = arith.constant 0 : i32
    %c0_i32_0 = arith.constant 0 : i32
    %c0_i32_1 = arith.constant 0 : i32
    return %c0_i32, %c0_i32_0 : i32, i32
  }
}

</mosaic_0001>

<llo_original>
// kernel: tpu_custom_call.1
$region0: #{tpu_custom_call.1}
  #allocation0 [shape = 'u32[]', space=smem, size = 0x4, offset = 0x4, fixed_abs, tag = 'smem constant byte address 0x4 - core index']
  #allocation1 [shape = 'u32[72,128]{1,0:T(1,128)}', space=vmem, size = 0x9000, scoped, tag = 'internal scratch']
  %s0 = inlined_call_operand.hbm [shape: f32[16,64], index: 0, kind: input, shape index: {}]
  %s1 = inlined_call_operand.hbm [shape: f32[16,32], index: 1, kind: input, shape index: {}]
  %s2 = inlined_call_operand.vmem [shape: f32[32,256], index: 2, kind: input, shape index: {}]
  %s3 = inlined_call_operand.vmem [shape: f32[32,64], index: 3, kind: input, shape index: {}]
  %s4 = inlined_call_operand.vmem [shape: f32[64,32], index: 4, kind: input, shape index: {}]
  %s5 = inlined_call_operand.hbm [shape: f32[8,64], index: 5, kind: input, shape index: {}]
  %s6 = inlined_call_operand.hbm [shape: f32[16,32], index: 6, kind: output, shape index: {}]
  %s7 = sld [smem:[#allocation0]]
  $region46: #{tpu_custom_call.1} parent=0
    _
  %s9 = ssub.s32 1, %s7
  %s10 = scalar_select 0, %s9, %s7
  $region1: #{tpu_custom_call.1} parent=0
    #allocation2 [shape = 'u8[8192]{0}', space=vmem, size = 0x2000, scoped, tag = 'input window, operand 0, single buffered']
    #allocation3 [shape = 's32[1]{0}', space=sflag, size = 0x4, scoped, tag = 'scoped memory for tpu_custom_call.1']
    #allocation4 [shape = 's32[1]{0}', space=sflag, size = 0x4, scoped, tag = 'scoped memory for tpu_custom_call.1']
    #allocation5 [shape = 'u8[8192]{0}', space=vmem, size = 0x2000, scoped, tag = 'input window, operand 1, single buffered']
    #allocation6 [shape = 's32[1]{0}', space=sflag, size = 0x4, scoped, tag = 'scoped memory for tpu_custom_call.1']
    #allocation7 [shape = 'u8[4096]{0}', space=vmem, size = 0x1000, scoped, tag = 'input window, operand 5, single buffered']
    #allocation8 [shape = 'u8[8192]{0}', space=vmem, size = 0x2000, scoped, tag = 'output window, operand 0, single buffered']
    %11 = vsyncpa [#allocation3], 0
    %12 = vsyncpa [#allocation6], 0
    %13 = vsyncpa [#allocation4], 0
    // Predicated region
    $region2: #{tpu_custom_call.1} parent=1 // pred_check
      _
    $region3: #{tpu_custom_call.1} parent=1 // pred_check_branch
      %15 = sbr.rel (0) target = $region5
    $region4: #{tpu_custom_call.1} parent=1 // pred_region
      %17 = vsyncadd [#allocation3], 0
      %s18 = sshll.u32 %s0, 4
      %s19 = int_to_ptr.hbm [resolvable:$true] %s18
      %s20 = sshll.u32 [#allocation2], 4
      %s21 = int_to_ptr.vmem [resolvable:$true] %s20
      %26 = dma.hbm_to_vmem [thread:$0]  %s19, 256, %s21, [#allocation3], 128, 128, 8
    $region5: #{tpu_custom_call.1} parent=1 // pred_fallthru
      _
    // Predicated region
    $region6: #{tpu_custom_call.1} parent=1 // pred_check
      _
    $region7: #{tpu_custom_call.1} parent=1 // pred_check_branch
      %28 = sbr.rel (0) target = $region9
    $region8: #{tpu_custom_call.1} parent=1 // pred_region
      %30 = vsyncadd [#allocation6], 0
      %s31 = sshll.u32 %s1, 4
      %s32 = int_to_ptr.hbm [resolvable:$true] %s31
      %s33 = sshll.u32 [#allocation5], 4
      %s34 = int_to_ptr.vmem [resolvable:$true] %s33
      %39 = dma.hbm_to_vmem [thread:$0]  %s32, 256, %s34, [#allocation6], 128, 128, 8
    $region9: #{tpu_custom_call.1} parent=1 // pred_fallthru
      _
    // Predicated region
    $region10: #{tpu_custom_call.1} parent=1 // pred_check
      _
    $region11: #{tpu_custom_call.1} parent=1 // pred_check_branch
      %41 = sbr.rel (0) target = $region13
    $region12: #{tpu_custom_call.1} parent=1 // pred_region
      _
    $region13: #{tpu_custom_call.1} parent=1 // pred_fallthru
      _
    // Predicated region
    $region14: #{tpu_custom_call.1} parent=1 // pred_check
      _
    $region15: #{tpu_custom_call.1} parent=1 // pred_check_branch
      %43 = sbr.rel (0) target = $region17
    $region16: #{tpu_custom_call.1} parent=1 // pred_region
      _
    $region17: #{tpu_custom_call.1} parent=1 // pred_fallthru
      _
    // Predicated region
    $region18: #{tpu_custom_call.1} parent=1 // pred_check
      _
    $region19: #{tpu_custom_call.1} parent=1 // pred_check_branch
      %45 = sbr.rel (0) target = $region21
    $region20: #{tpu_custom_call.1} parent=1 // pred_region
      _
    $region21: #{tpu_custom_call.1} parent=1 // pred_fallthru
      _
    // Predicated region
    $region22: #{tpu_custom_call.1} parent=1 // pred_check
      _
    $region23: #{tpu_custom_call.1} parent=1 // pred_check_branch
      %47 = sbr.rel (0) target = $region25
    $region24: #{tpu_custom_call.1} parent=1 // pred_region
      %49 = vsyncadd [#allocation6], 0
      %s51 = sshll.u32 %s5, 4
      %s52 = int_to_ptr.hbm [resolvable:$true] %s51
      %s53 = sshll.u32 [#allocation7], 4
      %s54 = int_to_ptr.vmem [resolvable:$true] %s53
      %56 = dma.hbm_to_vmem [thread:$0]  %s52, 128, %s54, [#allocation6]
    $region25: #{tpu_custom_call.1} parent=1 // pred_fallthru
      _
    // Predicated region
    $region26: #{tpu_custom_call.1} parent=1 // pred_check
      _
    $region27: #{tpu_custom_call.1} parent=1 // pred_check_branch
      %58 = sbr.rel (0) target = $region29
    $region28: #{tpu_custom_call.1} parent=1 // pred_region
      %60 = dma.done [#allocation3], 256
    $region29: #{tpu_custom_call.1} parent=1 // pred_fallthru
      _
    // Predicated region
    $region30: #{tpu_custom_call.1} parent=1 // pred_check
      _
    $region31: #{tpu_custom_call.1} parent=1 // pred_check_branch
      %62 = sbr.rel (0) target = $region33
    $region32: #{tpu_custom_call.1} parent=1 // pred_region
      %64 = dma.done [#allocation6], 256
    $region33: #{tpu_custom_call.1} parent=1 // pred_fallthru
      _
    // Predicated region
    $region34: #{tpu_custom_call.1} parent=1 // pred_check
      _
    $region35: #{tpu_custom_call.1} parent=1 // pred_check_branch
      %66 = sbr.rel (0) target = $region37
    $region36: #{tpu_custom_call.1} parent=1 // pred_region
      %68 = dma.done [#allocation6], 128
    $region37: #{tpu_custom_call.1} parent=1 // pred_fallthru
      _
    %v69 = vld [vmem:[#allocation2] sm:$0xff]
    %v70 = vld [vmem:[#allocation2 + $0x8] sm:$0xff]
    %vm71 = vcmp.gt.f32.partialorder %v69, 0.5
    %vm72 = vcmp.gt.f32.partialorder %v70, 0.5
    %v73 = vld [vmem:[#allocation5] sm:$0xff]
    %v74 = vld [vmem:[#allocation5 + $0x8] sm:$0xff]
    %v75 = vld [vmem:[%s2] sm:$0xff]
    %v76 = vld [vmem:[%s2 + $0x8] sm:$0xff]
    %v77 = vld [vmem:[%s2 + $0x10] sm:$0xff]
    %v78 = vld [vmem:[%s2 + $0x18] sm:$0xff]
    %v79 = vld [vmem:[%s2 + $0x20] sm:$0xff]
    %v80 = vld [vmem:[%s2 + $0x28] sm:$0xff]
    %v81 = vld [vmem:[%s2 + $0x30] sm:$0xff]
    %v82 = vld [vmem:[%s2 + $0x38] sm:$0xff]
    %v83 = vld [vmem:[#allocation7] sm:$0xff]
    %vm84 = vcmask 261120
    %v86 = vsel %vm84, %v69, 0
    %v89 = vsel %vm84, %v70, 0
    %91 = vmatpush.msra.mxu0 0.0
    %92 = vmatpush.msra.mxu0 0.0
    %93 = vmatpush.msra.mxu0 0.0
    %94 = vmatpush.msra.mxu0 0.0
    %95 = vmatpush.msra.mxu0 0.0
    %96 = vmatpush.msra.mxu0 0.0
    %97 = vmatpush.msra.mxu0 0.0
    %98 = vmatpush.msra.mxu0 0.0
    %99 = vmatpush.msra.mxu0 0.0
    %100 = vmatpush.msra.mxu0 0.0
    %101 = vmatpush.msra.mxu0 0.0
    %102 = vmatpush.msra.mxu0 0.0
    %103 = vmatpush.msra.mxu0 %v81
    %104 = vmatpush.msra.mxu0 %v79
    %105 = vmatpush.msra.mxu0 %v77
    %106 = vmatpush.msra.mxu0 %v75
    %107 = vmatmul.f32.gmra.mxu0 %v86
    %v108 = vpop.f32.mrf.mxu0
    %v109 = vadd.f32 0.0, %v108
    %110 = vmatmul.f32.gmra.mxu0 %v89
    %v111 = vpop.f32.mrf.mxu0
    %v112 = vadd.f32 0.0, %v111
    %113 = vdwg.mxu0
    %116 = vrot.lane.b32.xlu0 %v109, 96
    %v117 = vpop.permute.xlu0 %116
    %118 = vrot.lane.b32.xlu0 %v112, 96
    %v119 = vpop.permute.xlu0 %118
    %vm120 = vcmask 64512
    %v121 = vsel %vm120, %v109, 0
    %v123 = vsel %vm120, %v112, 0
    %v125 = vsel %vm120, %v117, 0
    %v127 = vsel %vm120, %v119, 0
    %129 = vmatpush.xpose.msra.mxu0 0.0
    %130 = vmatpush.xpose.msra.mxu0 0.0
    %131 = vmatpush.xpose.msra.mxu0 0.0
    %132 = vmatpush.xpose.msra.mxu0 0.0
    %133 = vmatpush.xpose.msra.mxu0 0.0
    %134 = vmatpush.xpose.msra.mxu0 0.0
    %135 = vmatpush.xpose.msra.mxu0 0.0
    %136 = vmatpush.xpose.msra.mxu0 0.0
    %137 = vmatpush.xpose.msra.mxu0 0.0
    %138 = vmatpush.xpose.msra.mxu0 0.0
    %139 = vmatpush.xpose.msra.mxu0 0.0
    %140 = vmatpush.xpose.msra.mxu0 0.0
    %141 = vmatpush.xpose.msra.mxu0 0.0
    %142 = vmatpush.xpose.msra.mxu0 0.0
    %143 = vmatpush.xpose.msra.mxu0 %v127
    %144 = vmatpush.xpose.msra.mxu0 %v125
    %145 = vmatmul.f32.gmra.mxu0 %v121
    %v146 = vpop.f32.mrf.mxu0
    %v147 = vadd.f32 0.0, %v146
    %148 = vmatmul.f32.gmra.mxu0 %v123
    %v149 = vpop.f32.mrf.mxu0
    %v150 = vadd.f32 0.0, %v149
    %151 = vdwg.mxu0
    %154 = vrot.lane.b32.xlu0 %v147, 32
    %v155 = vpop.permute.xlu0 %154
    %156 = vrot.lane.b32.xlu0 %v150, 32
    %v157 = vpop.permute.xlu0 %156
    %v160 = vsel %vm71, %v155, -1000000.0
    %v161 = vsel %vm72, %v157, -1000000.0
    %vm162 = vcmask 392448
    %v163 = vsel %vm162, %v160, -inf
    %164 = vmax.xlane.f32.xlu0 %v163
    %v165 = vpop.xlane.xlu0 %164
    %v166 = vsel %vm162, %v161, -inf
    %167 = vmax.xlane.f32.xlu0 %v166
    %v168 = vpop.xlane.xlu0 %167
    %v169 = vsub.f32 %v160, %v165
    %v170 = vsub.f32 %v161, %v168
    %v171 = vmul.f32 %v169, 1.442695
    %v172 = vpow.pop %v171
    %v173 = vmul.f32 %v170, 1.442695
    %v174 = vpow.pop %v173
    %177 = vrot.lane.b32.xlu0 %v172, 96
    %v178 = vpop.permute.xlu0 %177
    %179 = vrot.lane.b32.xlu0 %v174, 96
    %v180 = vpop.permute.xlu0 %179
    %vm183 = vcmask 130048
    %v184 = vsel %vm183, %v178, 0.0
    %185 = vadd.xlane.f32.xlu0 %v184
    %v186 = vpop.xlane.xlu0 %185
    %v187 = vsel %vm183, %v180, 0.0
    %188 = vadd.xlane.f32.xlu0 %v187
    %v189 = vpop.xlane.xlu0 %188
    %v190 = vrcp.pop %v186
    %v191 = vmul.f32 %v186, %v190
    %v192 = vsub.f32 1.0, %v191
    %v193 = vmul.f32 %v190, %v192
    %v194 = vadd.f32 %v190, %v193
    %vm195 = vweird.f32 %v186
    %vm196 = vweird.f32 %v190
    %vm197 = vmor %vm195, %vm196
    %v198 = vsel %vm197, %v190, %v194
    %v199 = vand.u32 2147483647, %v186
    %vm200 = vcmp.eq.f32.partialorder %v199, 8.507059e+37
    %v201 = vand.u32 %v186, 2147483648
    %v202 = vor.u32 1.1754944e-38, %v201
    %v203 = vsel %vm200, %v202, %v198
    %v204 = vmul.f32 %v172, %v203
    %v205 = vrcp.pop %v189
    %v206 = vmul.f32 %v189, %v205
    %v207 = vsub.f32 1.0, %v206
    %v208 = vmul.f32 %v205, %v207
    %v209 = vadd.f32 %v205, %v208
    %vm210 = vweird.f32 %v189
    %vm211 = vweird.f32 %v205
    %vm212 = vmor %vm210, %vm211
    %v213 = vsel %vm212, %v205, %v209
    %v214 = vand.u32 2147483647, %v189
    %vm215 = vcmp.eq.f32.partialorder %v214, 8.507059e+37
    %v216 = vand.u32 %v189, 2147483648
    %v217 = vor.u32 1.1754944e-38, %v216
    %v218 = vsel %vm215, %v217, %v213
    %v219 = vmul.f32 %v174, %v218
    %222 = vrot.lane.b32.xlu0 %v204, 96
    %v223 = vpop.permute.xlu0 %222
    %224 = vrot.lane.b32.xlu0 %v219, 96
    %v225 = vpop.permute.xlu0 %224
    %226 = vrot.lane.b32.xlu0 %v109, 64
    %v227 = vpop.permute.xlu0 %226
    %228 = vrot.lane.b32.xlu0 %v112, 64
    %v229 = vpop.permute.xlu0 %228
    %v232 = vsel %vm183, %v223, 0
    %v234 = vsel %vm183, %v225, 0
    %236 = vmatpush.msra.mxu0 0.0
    %237 = vmatpush.msra.mxu0 0.0
    %238 = vmatpush.msra.mxu0 0.0
    %239 = vmatpush.msra.mxu0 0.0
    %240 = vmatpush.msra.mxu0 0.0
    %241 = vmatpush.msra.mxu0 0.0
    %242 = vmatpush.msra.mxu0 0.0
    %243 = vmatpush.msra.mxu0 0.0
    %244 = vmatpush.msra.mxu0 0.0
    %245 = vmatpush.msra.mxu0 0.0
    %246 = vmatpush.msra.mxu0 0.0
    %247 = vmatpush.msra.mxu0 0.0
    %248 = vmatpush.msra.mxu0 0.0
    %249 = vmatpush.msra.mxu0 0.0
    %250 = vmatpush.msra.mxu0 %v229
    %251 = vmatpush.msra.mxu0 %v227
    %252 = vmatmul.f32.gmra.mxu0 %v232
    %v253 = vpop.f32.mrf.mxu0
    %v254 = vadd.f32 0.0, %v253
    %255 = vmatmul.f32.gmra.mxu0 %v234
    %v256 = vpop.f32.mrf.mxu0
    %v257 = vadd.f32 0.0, %v256
    %258 = vdwg.mxu0
    %259 = vrot.lane.b32.xlu0 %v109, 120
    %v260 = vpop.permute.xlu0 %259
    %261 = vrot.lane.b32.xlu0 %v112, 120
    %v262 = vpop.permute.xlu0 %261
    %263 = vrot.lane.b32.xlu0 %v109, 88
    %v264 = vpop.permute.xlu0 %263
    %265 = vrot.lane.b32.xlu0 %v112, 88
    %v266 = vpop.permute.xlu0 %265
    %v267 = vsel %vm120, %v260, 0
    %v269 = vsel %vm120, %v262, 0
    %v271 = vsel %vm120, %v264, 0
    %v273 = vsel %vm120, %v266, 0
    %275 = vmatpush.xpose.msra.mxu0 0.0
    %276 = vmatpush.xpose.msra.mxu0 0.0
    %277 = vmatpush.xpose.msra.mxu0 0.0
    %278 = vmatpush.xpose.msra.mxu0 0.0
    %279 = vmatpush.xpose.msra.mxu0 0.0
    %280 = vmatpush.xpose.msra.mxu0 0.0
    %281 = vmatpush.xpose.msra.mxu0 0.0
    %282 = vmatpush.xpose.msra.mxu0 0.0
    %283 = vmatpush.xpose.msra.mxu0 0.0
    %284 = vmatpush.xpose.msra.mxu0 0.0
    %285 = vmatpush.xpose.msra.mxu0 0.0
    %286 = vmatpush.xpose.msra.mxu0 0.0
    %287 = vmatpush.xpose.msra.mxu0 0.0
    %288 = vmatpush.xpose.msra.mxu0 0.0
    %289 = vmatpush.xpose.msra.mxu0 %v273
    %290 = vmatpush.xpose.msra.mxu0 %v271
    %291 = vmatmul.f32.gmra.mxu0 %v267
    %v292 = vpop.f32.mrf.mxu0
    %v293 = vadd.f32 0.0, %v292
    %294 = vmatmul.f32.gmra.mxu0 %v269
    %v295 = vpop.f32.mrf.mxu0
    %v296 = vadd.f32 0.0, %v295
    %297 = vdwg.mxu0
    %300 = vrot.lane.b32.xlu0 %v293, 32
    %v301 = vpop.permute.xlu0 %300
    %302 = vrot.lane.b32.xlu0 %v296, 32
    %v303 = vpop.permute.xlu0 %302
    %v306 = vsel %vm71, %v301, -1000000.0
    %v307 = vsel %vm72, %v303, -1000000.0
    %v308 = vsel %vm162, %v306, -inf
    %309 = vmax.xlane.f32.xlu0 %v308
    %v310 = vpop.xlane.xlu0 %309
    %v311 = vsel %vm162, %v307, -inf
    %312 = vmax.xlane.f32.xlu0 %v311
    %v313 = vpop.xlane.xlu0 %312
    %v314 = vsub.f32 %v306, %v310
    %v315 = vsub.f32 %v307, %v313
    %v316 = vmul.f32 %v314, 1.442695
    %v317 = vpow.pop %v316
    %v318 = vmul.f32 %v315, 1.442695
    %v319 = vpow.pop %v318
    %322 = vrot.lane.b32.xlu0 %v317, 96
    %v323 = vpop.permute.xlu0 %322
    %324 = vrot.lane.b32.xlu0 %v319, 96
    %v325 = vpop.permute.xlu0 %324
    %v328 = vsel %vm183, %v323, 0.0
    %329 = vadd.xlane.f32.xlu0 %v328
    %v330 = vpop.xlane.xlu0 %329
    %v331 = vsel %vm183, %v325, 0.0
    %332 = vadd.xlane.f32.xlu0 %v331
    %v333 = vpop.xlane.xlu0 %332
    %v334 = vrcp.pop %v330
    %v335 = vmul.f32 %v330, %v334
    %v336 = vsub.f32 1.0, %v335
    %v337 = vmul.f32 %v334, %v336
    %v338 = vadd.f32 %v334, %v337
    %vm339 = vweird.f32 %v330
    %vm340 = vweird.f32 %v334
    %vm341 = vmor %vm339, %vm340
    %v342 = vsel %vm341, %v334, %v338
    %v343 = vand.u32 2147483647, %v330
    %vm344 = vcmp.eq.f32.partialorder %v343, 8.507059e+37
    %v345 = vand.u32 %v330, 2147483648
    %v346 = vor.u32 1.1754944e-38, %v345
    %v347 = vsel %vm344, %v346, %v342
    %v348 = vmul.f32 %v317, %v347
    %v349 = vrcp.pop %v333
    %v350 = vmul.f32 %v333, %v349
    %v351 = vsub.f32 1.0, %v350
    %v352 = vmul.f32 %v349, %v351
    %v353 = vadd.f32 %v349, %v352
    %vm354 = vweird.f32 %v333
    %vm355 = vweird.f32 %v349
    %vm356 = vmor %vm354, %vm355
    %v357 = vsel %vm356, %v349, %v353
    %v358 = vand.u32 2147483647, %v333
    %vm359 = vcmp.eq.f32.partialorder %v358, 8.507059e+37
    %v360 = vand.u32 %v333, 2147483648
    %v361 = vor.u32 1.1754944e-38, %v360
    %v362 = vsel %vm359, %v361, %v357
    %v363 = vmul.f32 %v319, %v362
    %366 = vrot.lane.b32.xlu0 %v348, 96
    %v367 = vpop.permute.xlu0 %366
    %368 = vrot.lane.b32.xlu0 %v363, 96
    %v369 = vpop.permute.xlu0 %368
    %370 = vrot.lane.b32.xlu0 %v109, 56
    %v371 = vpop.permute.xlu0 %370
    %372 = vrot.lane.b32.xlu0 %v112, 56
    %v373 = vpop.permute.xlu0 %372
    %v376 = vsel %vm183, %v367, 0
    %v378 = vsel %vm183, %v369, 0
    %380 = vmatpush.msra.mxu0 0.0
    %381 = vmatpush.msra.mxu0 0.0
    %382 = vmatpush.msra.mxu0 0.0
    %383 = vmatpush.msra.mxu0 0.0
    %384 = vmatpush.msra.mxu0 0.0
    %385 = vmatpush.msra.mxu0 0.0
    %386 = vmatpush.msra.mxu0 0.0
    %387 = vmatpush.msra.mxu0 0.0
    %388 = vmatpush.msra.mxu0 0.0
    %389 = vmatpush.msra.mxu0 0.0
    %390 = vmatpush.msra.mxu0 0.0
    %391 = vmatpush.msra.mxu0 0.0
    %392 = vmatpush.msra.mxu0 0.0
    %393 = vmatpush.msra.mxu0 0.0
    %394 = vmatpush.msra.mxu0 %v373
    %395 = vmatpush.msra.mxu0 %v371
    %396 = vmatmul.f32.gmra.mxu0 %v376
    %v397 = vpop.f32.mrf.mxu0
    %v398 = vadd.f32 0.0, %v397
    %399 = vmatmul.f32.gmra.mxu0 %v378
    %v400 = vpop.f32.mrf.mxu0
    %v401 = vadd.f32 0.0, %v400
    %402 = vdwg.mxu0
    %403 = vrot.lane.b32.xlu0 %v109, 112
    %v404 = vpop.permute.xlu0 %403
    %405 = vrot.lane.b32.xlu0 %v112, 112
    %v406 = vpop.permute.xlu0 %405
    %407 = vrot.lane.b32.xlu0 %v109, 80
    %v408 = vpop.permute.xlu0 %407
    %409 = vrot.lane.b32.xlu0 %v112, 80
    %v410 = vpop.permute.xlu0 %409
    %v411 = vsel %vm120, %v404, 0
    %v413 = vsel %vm120, %v406, 0
    %v415 = vsel %vm120, %v408, 0
    %v417 = vsel %vm120, %v410, 0
    %419 = vmatpush.xpose.msra.mxu0 0.0
    %420 = vmatpush.xpose.msra.mxu0 0.0
    %421 = vmatpush.xpose.msra.mxu0 0.0
    %422 = vmatpush.xpose.msra.mxu0 0.0
    %423 = vmatpush.xpose.msra.mxu0 0.0
    %424 = vmatpush.xpose.msra.mxu0 0.0
    %425 = vmatpush.xpose.msra.mxu0 0.0
    %426 = vmatpush.xpose.msra.mxu0 0.0
    %427 = vmatpush.xpose.msra.mxu0 0.0
    %428 = vmatpush.xpose.msra.mxu0 0.0
    %429 = vmatpush.xpose.msra.mxu0 0.0
    %430 = vmatpush.xpose.msra.mxu0 0.0
    %431 = vmatpush.xpose.msra.mxu0 0.0
    %432 = vmatpush.xpose.msra.mxu0 0.0
    %433 = vmatpush.xpose.msra.mxu0 %v417
    %434 = vmatpush.xpose.msra.mxu0 %v415
    %435 = vmatmul.f32.gmra.mxu0 %v411
    %v436 = vpop.f32.mrf.mxu0
    %v437 = vadd.f32 0.0, %v436
    %438 = vmatmul.f32.gmra.mxu0 %v413
    %v439 = vpop.f32.mrf.mxu0
    %v440 = vadd.f32 0.0, %v439
    %441 = vdwg.mxu0
    %444 = vrot.lane.b32.xlu0 %v437, 32
    %v445 = vpop.permute.xlu0 %444
    %446 = vrot.lane.b32.xlu0 %v440, 32
    %v447 = vpop.permute.xlu0 %446
    %v450 = vsel %vm71, %v445, -1000000.0
    %v451 = vsel %vm72, %v447, -1000000.0
    %v452 = vsel %vm162, %v450, -inf
    %453 = vmax.xlane.f32.xlu0 %v452
    %v454 = vpop.xlane.xlu0 %453
    %v455 = vsel %vm162, %v451, -inf
    %456 = vmax.xlane.f32.xlu0 %v455
    %v457 = vpop.xlane.xlu0 %456
    %v458 = vsub.f32 %v450, %v454
    %v459 = vsub.f32 %v451, %v457
    %v460 = vmul.f32 %v458, 1.442695
    %v461 = vpow.pop %v460
    %v462 = vmul.f32 %v459, 1.442695
    %v463 = vpow.pop %v462
    %466 = vrot.lane.b32.xlu0 %v461, 96
    %v467 = vpop.permute.xlu0 %466
    %468 = vrot.lane.b32.xlu0 %v463, 96
    %v469 = vpop.permute.xlu0 %468
    %v472 = vsel %vm183, %v467, 0.0
    %473 = vadd.xlane.f32.xlu0 %v472
    %v474 = vpop.xlane.xlu0 %473
    %v475 = vsel %vm183, %v469, 0.0
    %476 = vadd.xlane.f32.xlu0 %v475
    %v477 = vpop.xlane.xlu0 %476
    %v478 = vrcp.pop %v474
    %v479 = vmul.f32 %v474, %v478
    %v480 = vsub.f32 1.0, %v479
    %v481 = vmul.f32 %v478, %v480
    %v482 = vadd.f32 %v478, %v481
    %vm483 = vweird.f32 %v474
    %vm484 = vweird.f32 %v478
    %vm485 = vmor %vm483, %vm484
    %v486 = vsel %vm485, %v478, %v482
    %v487 = vand.u32 2147483647, %v474
    %vm488 = vcmp.eq.f32.partialorder %v487, 8.507059e+37
    %v489 = vand.u32 %v474, 2147483648
    %v490 = vor.u32 1.1754944e-38, %v489
    %v491 = vsel %vm488, %v490, %v486
    %v492 = vmul.f32 %v461, %v491
    %v493 = vrcp.pop %v477
    %v494 = vmul.f32 %v477, %v493
    %v495 = vsub.f32 1.0, %v494
    %v496 = vmul.f32 %v493, %v495
    %v497 = vadd.f32 %v493, %v496
    %vm498 = vweird.f32 %v477
    %vm499 = vweird.f32 %v493
    %vm500 = vmor %vm498, %vm499
    %v501 = vsel %vm500, %v493, %v497
    %v502 = vand.u32 2147483647, %v477
    %vm503 = vcmp.eq.f32.partialorder %v502, 8.507059e+37
    %v504 = vand.u32 %v477, 2147483648
    %v505 = vor.u32 1.1754944e-38, %v504
    %v506 = vsel %vm503, %v505, %v501
    %v507 = vmul.f32 %v463, %v506
    %510 = vrot.lane.b32.xlu0 %v492, 96
    %v511 = vpop.permute.xlu0 %510
    %512 = vrot.lane.b32.xlu0 %v507, 96
    %v513 = vpop.permute.xlu0 %512
    %514 = vrot.lane.b32.xlu0 %v109, 48
    %v515 = vpop.permute.xlu0 %514
    %516 = vrot.lane.b32.xlu0 %v112, 48
    %v517 = vpop.permute.xlu0 %516
    %v520 = vsel %vm183, %v511, 0
    %v522 = vsel %vm183, %v513, 0
    %524 = vmatpush.msra.mxu0 0.0
    %525 = vmatpush.msra.mxu0 0.0
    %526 = vmatpush.msra.mxu0 0.0
    %527 = vmatpush.msra.mxu0 0.0
    %528 = vmatpush.msra.mxu0 0.0
    %529 = vmatpush.msra.mxu0 0.0
    %530 = vmatpush.msra.mxu0 0.0
    %531 = vmatpush.msra.mxu0 0.0
    %532 = vmatpush.msra.mxu0 0.0
    %533 = vmatpush.msra.mxu0 0.0
    %534 = vmatpush.msra.mxu0 0.0
    %535 = vmatpush.msra.mxu0 0.0
    %536 = vmatpush.msra.mxu0 0.0
    %537 = vmatpush.msra.mxu0 0.0
    %538 = vmatpush.msra.mxu0 %v517
    %539 = vmatpush.msra.mxu0 %v515
    %540 = vmatmul.f32.gmra.mxu0 %v520
    %v541 = vpop.f32.mrf.mxu0
    %v542 = vadd.f32 0.0, %v541
    %543 = vmatmul.f32.gmra.mxu0 %v522
    %v544 = vpop.f32.mrf.mxu0
    %v545 = vadd.f32 0.0, %v544
    %546 = vdwg.mxu0
    %547 = vrot.lane.b32.xlu0 %v109, 104
    %v548 = vpop.permute.xlu0 %547
    %549 = vrot.lane.b32.xlu0 %v112, 104
    %v550 = vpop.permute.xlu0 %549
    %551 = vrot.lane.b32.xlu0 %v109, 72
    %v552 = vpop.permute.xlu0 %551
    %553 = vrot.lane.b32.xlu0 %v112, 72
    %v554 = vpop.permute.xlu0 %553
    %v555 = vsel %vm120, %v548, 0
    %v557 = vsel %vm120, %v550, 0
    %v559 = vsel %vm120, %v552, 0
    %v561 = vsel %vm120, %v554, 0
    %563 = vmatpush.xpose.msra.mxu0 0.0
    %564 = vmatpush.xpose.msra.mxu0 0.0
    %565 = vmatpush.xpose.msra.mxu0 0.0
    %566 = vmatpush.xpose.msra.mxu0 0.0
    %567 = vmatpush.xpose.msra.mxu0 0.0
    %568 = vmatpush.xpose.msra.mxu0 0.0
    %569 = vmatpush.xpose.msra.mxu0 0.0
    %570 = vmatpush.xpose.msra.mxu0 0.0
    %571 = vmatpush.xpose.msra.mxu0 0.0
    %572 = vmatpush.xpose.msra.mxu0 0.0
    %573 = vmatpush.xpose.msra.mxu0 0.0
    %574 = vmatpush.xpose.msra.mxu0 0.0
    %575 = vmatpush.xpose.msra.mxu0 0.0
    %576 = vmatpush.xpose.msra.mxu0 0.0
    %577 = vmatpush.xpose.msra.mxu0 %v561
    %578 = vmatpush.xpose.msra.mxu0 %v559
    %579 = vmatmul.f32.gmra.mxu0 %v555
    %v580 = vpop.f32.mrf.mxu0
    %v581 = vadd.f32 0.0, %v580
    %582 = vmatmul.f32.gmra.mxu0 %v557
    %v583 = vpop.f32.mrf.mxu0
    %v584 = vadd.f32 0.0, %v583
    %585 = vdwg.mxu0
    %588 = vrot.lane.b32.xlu0 %v581, 32
    %v589 = vpop.permute.xlu0 %588
    %590 = vrot.lane.b32.xlu0 %v584, 32
    %v591 = vpop.permute.xlu0 %590
    %v594 = vsel %vm71, %v589, -1000000.0
    %v595 = vsel %vm72, %v591, -1000000.0
    %v596 = vsel %vm162, %v594, -inf
    %597 = vmax.xlane.f32.xlu0 %v596
    %v598 = vpop.xlane.xlu0 %597
    %v599 = vsel %vm162, %v595, -inf
    %600 = vmax.xlane.f32.xlu0 %v599
    %v601 = vpop.xlane.xlu0 %600
    %v602 = vsub.f32 %v594, %v598
    %v603 = vsub.f32 %v595, %v601
    %v604 = vmul.f32 %v602, 1.442695
    %v605 = vpow.pop %v604
    %v606 = vmul.f32 %v603, 1.442695
    %v607 = vpow.pop %v606
    %610 = vrot.lane.b32.xlu0 %v605, 96
    %v611 = vpop.permute.xlu0 %610
    %612 = vrot.lane.b32.xlu0 %v607, 96
    %v613 = vpop.permute.xlu0 %612
    %v616 = vsel %vm183, %v611, 0.0
    %617 = vadd.xlane.f32.xlu0 %v616
    %v618 = vpop.xlane.xlu0 %617
    %v619 = vsel %vm183, %v613, 0.0
    %620 = vadd.xlane.f32.xlu0 %v619
    %v621 = vpop.xlane.xlu0 %620
    %v622 = vrcp.pop %v618
    %v623 = vmul.f32 %v618, %v622
    %v624 = vsub.f32 1.0, %v623
    %v625 = vmul.f32 %v622, %v624
    %v626 = vadd.f32 %v622, %v625
    %vm627 = vweird.f32 %v618
    %vm628 = vweird.f32 %v622
    %vm629 = vmor %vm627, %vm628
    %v630 = vsel %vm629, %v622, %v626
    %v631 = vand.u32 2147483647, %v618
    %vm632 = vcmp.eq.f32.partialorder %v631, 8.507059e+37
    %v633 = vand.u32 %v618, 2147483648
    %v634 = vor.u32 1.1754944e-38, %v633
    %v635 = vsel %vm632, %v634, %v630
    %v636 = vmul.f32 %v605, %v635
    %v637 = vrcp.pop %v621
    %v638 = vmul.f32 %v621, %v637
    %v639 = vsub.f32 1.0, %v638
    %v640 = vmul.f32 %v637, %v639
    %v641 = vadd.f32 %v637, %v640
    %vm642 = vweird.f32 %v621
    %vm643 = vweird.f32 %v637
    %vm644 = vmor %vm642, %vm643
    %v645 = vsel %vm644, %v637, %v641
    %v646 = vand.u32 2147483647, %v621
    %vm647 = vcmp.eq.f32.partialorder %v646, 8.507059e+37
    %v648 = vand.u32 %v621, 2147483648
    %v649 = vor.u32 1.1754944e-38, %v648
    %v650 = vsel %vm647, %v649, %v645
    %v651 = vmul.f32 %v607, %v650
    %654 = vrot.lane.b32.xlu0 %v636, 96
    %v655 = vpop.permute.xlu0 %654
    %656 = vrot.lane.b32.xlu0 %v651, 96
    %v657 = vpop.permute.xlu0 %656
    %658 = vrot.lane.b32.xlu0 %v109, 40
    %v659 = vpop.permute.xlu0 %658
    %660 = vrot.lane.b32.xlu0 %v112, 40
    %v661 = vpop.permute.xlu0 %660
    %v664 = vsel %vm183, %v655, 0
    %v666 = vsel %vm183, %v657, 0
    %668 = vmatpush.msra.mxu0 0.0
    %669 = vmatpush.msra.mxu0 0.0
    %670 = vmatpush.msra.mxu0 0.0
    %671 = vmatpush.msra.mxu0 0.0
    %672 = vmatpush.msra.mxu0 0.0
    %673 = vmatpush.msra.mxu0 0.0
    %674 = vmatpush.msra.mxu0 0.0
    %675 = vmatpush.msra.mxu0 0.0
    %676 = vmatpush.msra.mxu0 0.0
    %677 = vmatpush.msra.mxu0 0.0
    %678 = vmatpush.msra.mxu0 0.0
    %679 = vmatpush.msra.mxu0 0.0
    %680 = vmatpush.msra.mxu0 0.0
    %681 = vmatpush.msra.mxu0 0.0
    %682 = vmatpush.msra.mxu0 %v661
    %683 = vmatpush.msra.mxu0 %v659
    %684 = vmatmul.f32.gmra.mxu0 %v664
    %v685 = vpop.f32.mrf.mxu0
    %v686 = vadd.f32 0.0, %v685
    %687 = vmatmul.f32.gmra.mxu0 %v666
    %v688 = vpop.f32.mrf.mxu0
    %v689 = vadd.f32 0.0, %v688
    %690 = vdwg.mxu0
    %693 = vrot.lane.b32.xlu0 %v398, 8
    %v694 = vpop.permute.xlu0 %693
    %695 = vrot.lane.b32.xlu0 %v401, 8
    %v696 = vpop.permute.xlu0 %695
    %701 = vrot.lane.b32.xlu0 %v542, 16
    %v702 = vpop.permute.xlu0 %701
    %703 = vrot.lane.b32.xlu0 %v545, 16
    %v704 = vpop.permute.xlu0 %703
    %709 = vrot.lane.b32.xlu0 %v686, 24
    %v710 = vpop.permute.xlu0 %709
    %711 = vrot.lane.b32.xlu0 %v689, 24
    %v712 = vpop.permute.xlu0 %711
    %v715 = vsel %vm120, %v254, %v694
    %v716 = vsel %vm120, %v257, %v696
    %v717 = vsel %vm183, %v715, %v702
    %v718 = vsel %vm183, %v716, %v704
    %vm719 = vcmask 195584
    %v720 = vsel %vm719, %v717, %v710
    %v721 = vsel %vm719, %v718, %v712
    %726 = vrot.lane.b32.xlu0 %v75, 32
    %v727 = vpop.permute.xlu0 %726
    %728 = vrot.lane.b32.xlu0 %v77, 32
    %v729 = vpop.permute.xlu0 %728
    %730 = vrot.lane.b32.xlu0 %v79, 32
    %v731 = vpop.permute.xlu0 %730
    %732 = vrot.lane.b32.xlu0 %v81, 32
    %v733 = vpop.permute.xlu0 %732
    %v739 = vsel %vm84, %v720, 0
    %v742 = vsel %vm84, %v721, 0
    %744 = vmatpush.msra.mxu0 0.0
    %745 = vmatpush.msra.mxu0 0.0
    %746 = vmatpush.msra.mxu0 0.0
    %747 = vmatpush.msra.mxu0 0.0
    %748 = vmatpush.msra.mxu0 0.0
    %749 = vmatpush.msra.mxu0 0.0
    %750 = vmatpush.msra.mxu0 0.0
    %751 = vmatpush.msra.mxu0 0.0
    %752 = vmatpush.msra.mxu0 0.0
    %753 = vmatpush.msra.mxu0 0.0
    %754 = vmatpush.msra.mxu0 0.0
    %755 = vmatpush.msra.mxu0 0.0
    %756 = vmatpush.msra.mxu0 %v733
    %757 = vmatpush.msra.mxu0 %v731
    %758 = vmatpush.msra.mxu0 %v729
    %759 = vmatpush.msra.mxu0 %v727
    %760 = vmatmul.f32.gmra.mxu0 %v739
    %v761 = vpop.f32.mrf.mxu0
    %v762 = vadd.f32 0.0, %v761
    %763 = vmatmul.f32.gmra.mxu0 %v742
    %v764 = vpop.f32.mrf.mxu0
    %v765 = vadd.f32 0.0, %v764
    %766 = vdwg.mxu0
    %v767 = vadd.f32 %v69, %v762
    %v768 = vadd.f32 %v70, %v765
    %v769 = vsel %vm84, %v767, 0.0
    %770 = vadd.xlane.f32.xlu0 %v769
    %v771 = vpop.xlane.xlu0 %770
    %v772 = vsel %vm84, %v768, 0.0
    %773 = vadd.xlane.f32.xlu0 %v772
    %v774 = vpop.xlane.xlu0 %773
    %v775 = vrcp.pop 32.0
    %v776 = vmul.f32 32.0, %v775
    %v777 = vsub.f32 1.0, %v776
    %v778 = vmul.f32 %v775, %v777
    %v779 = vadd.f32 %v775, %v778
    %vm780 = vweird.f32 %v775
    %v781 = vsel %vm780, %v775, %v779
    %v782 = vmul.f32 %v771, %v781
    %v783 = vmul.f32 %v774, %v781
    %v784 = vsub.f32 %v767, %v782
    %v785 = vsub.f32 %v768, %v783
    %v786 = vmul.f32 %v784, %v784
    %v787 = vmul.f32 %v785, %v785
    %v788 = vsel %vm84, %v786, 0.0
    %789 = vadd.xlane.f32.xlu0 %v788
    %v790 = vpop.xlane.xlu0 %789
    %v791 = vsel %vm84, %v787, 0.0
    %792 = vadd.xlane.f32.xlu0 %v791
    %v793 = vpop.xlane.xlu0 %792
    %v794 = vmul.f32 %v790, %v781
    %v795 = vmul.f32 %v793, %v781
    %v796 = vadd.f32 %v794, 1e-05
    %v797 = vadd.f32 %v795, 1e-05
    %v798 = vrsqrt.pop %v796
    %v799 = vmul.f32 %v798, %v796
    %v800 = vmul.f32 %v799, %v798
    %v801 = vmul.f32 0.5, %v800
    %v802 = vsub.f32 1.5, %v801
    %v803 = vmul.f32 %v798, %v802
    %vm804 = vweird.f32 %v796
    %vm805 = vweird.f32 %v798
    %vm806 = vmor %vm804, %vm805
    %v807 = vsel %vm806, %v798, %v803
    %v808 = vrsqrt.pop %v797
    %v809 = vmul.f32 %v808, %v797
    %v810 = vmul.f32 %v809, %v808
    %v811 = vmul.f32 0.5, %v810
    %v812 = vsub.f32 1.5, %v811
    %v813 = vmul.f32 %v808, %v812
    %vm814 = vweird.f32 %v797
    %vm815 = vweird.f32 %v808
    %vm816 = vmor %vm814, %vm815
    %v817 = vsel %vm816, %v808, %v813
    %v818 = vmul.f32 %v784, %v807
    %v819 = vmul.f32 %v785, %v817
    %v820 = vperm.slane %v83, 0
    %v821 = vmul.f32 %v818, %v820
    %v822 = vmul.f32 %v819, %v820
    %v823 = vperm.slane %v83, 1
    %v824 = vadd.f32 %v821, %v823
    %v825 = vadd.f32 %v822, %v823
    %v827 = vsel %vm84, %v824, 0
    %v830 = vsel %vm84, %v825, 0
    %832 = vmatpush.msra.mxu0 0.0
    %833 = vmatpush.msra.mxu0 0.0
    %834 = vmatpush.msra.mxu0 0.0
    %835 = vmatpush.msra.mxu0 0.0
    %836 = vmatpush.msra.mxu0 0.0
    %837 = vmatpush.msra.mxu0 0.0
    %838 = vmatpush.msra.mxu0 0.0
    %839 = vmatpush.msra.mxu0 0.0
    %840 = vmatpush.msra.mxu0 0.0
    %841 = vmatpush.msra.mxu0 0.0
    %842 = vmatpush.msra.mxu0 0.0
    %843 = vmatpush.msra.mxu0 0.0
    %844 = vmatpush.msra.mxu0 %v82
    %845 = vmatpush.msra.mxu0 %v80
    %846 = vmatpush.msra.mxu0 %v78
    %847 = vmatpush.msra.mxu0 %v76
    %848 = vmatmul.f32.gmra.mxu0 %v827
    %v849 = vpop.f32.mrf.mxu0
    %v850 = vadd.f32 0.0, %v849
    %851 = vmatmul.f32.gmra.mxu0 %v830
    %v852 = vpop.f32.mrf.mxu0
    %v853 = vadd.f32 0.0, %v852
    %854 = vdwg.mxu0
    %859 = vrot.lane.b32.xlu0 %v76, 96
    %v860 = vpop.permute.xlu0 %859
    %861 = vrot.lane.b32.xlu0 %v78, 96
    %v862 = vpop.permute.xlu0 %861
    %863 = vrot.lane.b32.xlu0 %v80, 96
    %v864 = vpop.permute.xlu0 %863
    %865 = vrot.lane.b32.xlu0 %v82, 96
    %v866 = vpop.permute.xlu0 %865
    %v872 = vsel %vm84, %v73, 0
    %v875 = vsel %vm84, %v74, 0
    %877 = vmatpush.msra.mxu0 0.0
    %878 = vmatpush.msra.mxu0 0.0
    %879 = vmatpush.msra.mxu0 0.0
    %880 = vmatpush.msra.mxu0 0.0
    %881 = vmatpush.msra.mxu0 0.0
    %882 = vmatpush.msra.mxu0 0.0
    %883 = vmatpush.msra.mxu0 0.0
    %884 = vmatpush.msra.mxu0 0.0
    %885 = vmatpush.msra.mxu0 0.0
    %886 = vmatpush.msra.mxu0 0.0
    %887 = vmatpush.msra.mxu0 0.0
    %888 = vmatpush.msra.mxu0 0.0
    %889 = vmatpush.msra.mxu0 %v866
    %890 = vmatpush.msra.mxu0 %v864
    %891 = vmatpush.msra.mxu0 %v862
    %892 = vmatpush.msra.mxu0 %v860
    %893 = vmatmul.f32.gmra.mxu0 %v872
    %v894 = vpop.f32.mrf.mxu0
    %v895 = vadd.f32 0.0, %v894
    %896 = vmatmul.f32.gmra.mxu0 %v875
    %v897 = vpop.f32.mrf.mxu0
    %v898 = vadd.f32 0.0, %v897
    %899 = vdwg.mxu0
    %v901 = vsel %vm120, %v850, 0
    %v904 = vsel %vm120, %v853, 0
    %v907 = vsel %vm120, %v895, 0
    %v910 = vsel %vm120, %v898, 0
    %912 = vmatpush.xpose.msra.mxu0 0.0
    %913 = vmatpush.xpose.msra.mxu0 0.0
    %914 = vmatpush.xpose.msra.mxu0 0.0
    %915 = vmatpush.xpose.msra.mxu0 0.0
    %916 = vmatpush.xpose.msra.mxu0 0.0
    %917 = vmatpush.xpose.msra.mxu0 0.0
    %918 = vmatpush.xpose.msra.mxu0 0.0
    %919 = vmatpush.xpose.msra.mxu0 0.0
    %920 = vmatpush.xpose.msra.mxu0 0.0
    %921 = vmatpush.xpose.msra.mxu0 0.0
    %922 = vmatpush.xpose.msra.mxu0 0.0
    %923 = vmatpush.xpose.msra.mxu0 0.0
    %924 = vmatpush.xpose.msra.mxu0 0.0
    %925 = vmatpush.xpose.msra.mxu0 0.0
    %926 = vmatpush.xpose.msra.mxu0 %v910
    %927 = vmatpush.xpose.msra.mxu0 %v907
    %928 = vmatmul.f32.gmra.mxu0 %v901
    %v929 = vpop.f32.mrf.mxu0
    %v930 = vadd.f32 0.0, %v929
    %931 = vmatmul.f32.gmra.mxu0 %v904
    %v932 = vpop.f32.mrf.mxu0
    %v933 = vadd.f32 0.0, %v932
    %934 = vdwg.mxu0
    %937 = vrot.lane.b32.xlu0 %v930, 48
    %v938 = vpop.permute.xlu0 %937
    %939 = vrot.lane.b32.xlu0 %v933, 48
    %v940 = vpop.permute.xlu0 %939
    %v943 = vsel %vm71, %v938, -1000000.0
    %v944 = vsel %vm72, %v940, -1000000.0
    %vm945 = vcmask 523648
    %v946 = vsel %vm945, %v943, -inf
    %947 = vmax.xlane.f32.xlu0 %v946
    %v948 = vpop.xlane.xlu0 %947
    %v949 = vsel %vm945, %v944, -inf
    %950 = vmax.xlane.f32.xlu0 %v949
    %v951 = vpop.xlane.xlu0 %950
    %v952 = vsub.f32 %v943, %v948
    %v953 = vsub.f32 %v944, %v951
    %v954 = vmul.f32 %v952, 1.442695
    %v955 = vpow.pop %v954
    %v956 = vmul.f32 %v953, 1.442695
    %v957 = vpow.pop %v956
    %960 = vrot.lane.b32.xlu0 %v955, 80
    %v961 = vpop.permute.xlu0 %960
    %962 = vrot.lane.b32.xlu0 %v957, 80
    %v963 = vpop.permute.xlu0 %962
    %v966 = vsel %vm183, %v961, 0.0
    %967 = vadd.xlane.f32.xlu0 %v966
    %v968 = vpop.xlane.xlu0 %967
    %v969 = vsel %vm183, %v963, 0.0
    %970 = vadd.xlane.f32.xlu0 %v969
    %v971 = vpop.xlane.xlu0 %970
    %v972 = vrcp.pop %v968
    %v973 = vmul.f32 %v968, %v972
    %v974 = vsub.f32 1.0, %v973
    %v975 = vmul.f32 %v972, %v974
    %v976 = vadd.f32 %v972, %v975
    %vm977 = vweird.f32 %v968
    %vm978 = vweird.f32 %v972
    %vm979 = vmor %vm977, %vm978
    %v980 = vsel %vm979, %v972, %v976
    %v981 = vand.u32 2147483647, %v968
    %vm982 = vcmp.eq.f32.partialorder %v981, 8.507059e+37
    %v983 = vand.u32 %v968, 2147483648
    %v984 = vor.u32 1.1754944e-38, %v983
    %v985 = vsel %vm982, %v984, %v980
    %v986 = vmul.f32 %v955, %v985
    %v987 = vrcp.pop %v971
    %v988 = vmul.f32 %v971, %v987
    %v989 = vsub.f32 1.0, %v988
    %v990 = vmul.f32 %v987, %v989
    %v991 = vadd.f32 %v987, %v990
    %vm992 = vweird.f32 %v971
    %vm993 = vweird.f32 %v987
    %vm994 = vmor %vm992, %vm993
    %v995 = vsel %vm994, %v987, %v991
    %v996 = vand.u32 2147483647, %v971
    %vm997 = vcmp.eq.f32.partialorder %v996, 8.507059e+37
    %v998 = vand.u32 %v971, 2147483648
    %v999 = vor.u32 1.1754944e-38, %v998
    %v1000 = vsel %vm997, %v999, %v995
    %v1001 = vmul.f32 %v957, %v1000
    %1004 = vrot.lane.b32.xlu0 %v986, 80
    %v1005 = vpop.permute.xlu0 %1004
    %1006 = vrot.lane.b32.xlu0 %v1001, 80
    %v1007 = vpop.permute.xlu0 %1006
    %1008 = vrot.lane.b32.xlu0 %v895, 96
    %v1009 = vpop.permute.xlu0 %1008
    %1010 = vrot.lane.b32.xlu0 %v898, 96
    %v1011 = vpop.permute.xlu0 %1010
    %v1014 = vsel %vm183, %v1005, 0
    %v1016 = vsel %vm183, %v1007, 0
    %1018 = vmatpush.msra.mxu0 0.0
    %1019 = vmatpush.msra.mxu0 0.0
    %1020 = vmatpush.msra.mxu0 0.0
    %1021 = vmatpush.msra.mxu0 0.0
    %1022 = vmatpush.msra.mxu0 0.0
    %1023 = vmatpush.msra.mxu0 0.0
    %1024 = vmatpush.msra.mxu0 0.0
    %1025 = vmatpush.msra.mxu0 0.0
    %1026 = vmatpush.msra.mxu0 0.0
    %1027 = vmatpush.msra.mxu0 0.0
    %1028 = vmatpush.msra.mxu0 0.0
    %1029 = vmatpush.msra.mxu0 0.0
    %1030 = vmatpush.msra.mxu0 0.0
    %1031 = vmatpush.msra.mxu0 0.0
    %1032 = vmatpush.msra.mxu0 %v1011
    %1033 = vmatpush.msra.mxu0 %v1009
    %1034 = vmatmul.f32.gmra.mxu0 %v1014
    %v1035 = vpop.f32.mrf.mxu0
    %v1036 = vadd.f32 0.0, %v1035
    %1037 = vmatmul.f32.gmra.mxu0 %v1016
    %v1038 = vpop.f32.mrf.mxu0
    %v1039 = vadd.f32 0.0, %v1038
    %1040 = vdwg.mxu0
    %1041 = vrot.lane.b32.xlu0 %v850, 120
    %v1042 = vpop.permute.xlu0 %1041
    %1043 = vrot.lane.b32.xlu0 %v853, 120
    %v1044 = vpop.permute.xlu0 %1043
    %1045 = vrot.lane.b32.xlu0 %v895, 120
    %v1046 = vpop.permute.xlu0 %1045
    %1047 = vrot.lane.b32.xlu0 %v898, 120
    %v1048 = vpop.permute.xlu0 %1047
    %v1049 = vsel %vm120, %v1042, 0
    %v1051 = vsel %vm120, %v1044, 0
    %v1053 = vsel %vm120, %v1046, 0
    %v1055 = vsel %vm120, %v1048, 0
    %1057 = vmatpush.xpose.msra.mxu0 0.0
    %1058 = vmatpush.xpose.msra.mxu0 0.0
    %1059 = vmatpush.xpose.msra.mxu0 0.0
    %1060 = vmatpush.xpose.msra.mxu0 0.0
    %1061 = vmatpush.xpose.msra.mxu0 0.0
    %1062 = vmatpush.xpose.msra.mxu0 0.0
    %1063 = vmatpush.xpose.msra.mxu0 0.0
    %1064 = vmatpush.xpose.msra.mxu0 0.0
    %1065 = vmatpush.xpose.msra.mxu0 0.0
    %1066 = vmatpush.xpose.msra.mxu0 0.0
    %1067 = vmatpush.xpose.msra.mxu0 0.0
    %1068 = vmatpush.xpose.msra.mxu0 0.0
    %1069 = vmatpush.xpose.msra.mxu0 0.0
    %1070 = vmatpush.xpose.msra.mxu0 0.0
    %1071 = vmatpush.xpose.msra.mxu0 %v1055
    %1072 = vmatpush.xpose.msra.mxu0 %v1053
    %1073 = vmatmul.f32.gmra.mxu0 %v1049
    %v1074 = vpop.f32.mrf.mxu0
    %v1075 = vadd.f32 0.0, %v1074
    %1076 = vmatmul.f32.gmra.mxu0 %v1051
    %v1077 = vpop.f32.mrf.mxu0
    %v1078 = vadd.f32 0.0, %v1077
    %1079 = vdwg.mxu0
    %1082 = vrot.lane.b32.xlu0 %v1075, 48
    %v1083 = vpop.permute.xlu0 %1082
    %1084 = vrot.lane.b32.xlu0 %v1078, 48
    %v1085 = vpop.permute.xlu0 %1084
    %v1088 = vsel %vm71, %v1083, -1000000.0
    %v1089 = vsel %vm72, %v1085, -1000000.0
    %v1090 = vsel %vm945, %v1088, -inf
    %1091 = vmax.xlane.f32.xlu0 %v1090
    %v1092 = vpop.xlane.xlu0 %1091
    %v1093 = vsel %vm945, %v1089, -inf
    %1094 = vmax.xlane.f32.xlu0 %v1093
    %v1095 = vpop.xlane.xlu0 %1094
    %v1096 = vsub.f32 %v1088, %v1092
    %v1097 = vsub.f32 %v1089, %v1095
    %v1098 = vmul.f32 %v1096, 1.442695
    %v1099 = vpow.pop %v1098
    %v1100 = vmul.f32 %v1097, 1.442695
    %v1101 = vpow.pop %v1100
    %1104 = vrot.lane.b32.xlu0 %v1099, 80
    %v1105 = vpop.permute.xlu0 %1104
    %1106 = vrot.lane.b32.xlu0 %v1101, 80
    %v1107 = vpop.permute.xlu0 %1106
    %v1110 = vsel %vm183, %v1105, 0.0
    %1111 = vadd.xlane.f32.xlu0 %v1110
    %v1112 = vpop.xlane.xlu0 %1111
    %v1113 = vsel %vm183, %v1107, 0.0
    %1114 = vadd.xlane.f32.xlu0 %v1113
    %v1115 = vpop.xlane.xlu0 %1114
    %v1116 = vrcp.pop %v1112
    %v1117 = vmul.f32 %v1112, %v1116
    %v1118 = vsub.f32 1.0, %v1117
    %v1119 = vmul.f32 %v1116, %v1118
    %v1120 = vadd.f32 %v1116, %v1119
    %vm1121 = vweird.f32 %v1112
    %vm1122 = vweird.f32 %v1116
    %vm1123 = vmor %vm1121, %vm1122
    %v1124 = vsel %vm1123, %v1116, %v1120
    %v1125 = vand.u32 2147483647, %v1112
    %vm1126 = vcmp.eq.f32.partialorder %v1125, 8.507059e+37
    %v1127 = vand.u32 %v1112, 2147483648
    %v1128 = vor.u32 1.1754944e-38, %v1127
    %v1129 = vsel %vm1126, %v1128, %v1124
    %v1130 = vmul.f32 %v1099, %v1129
    %v1131 = vrcp.pop %v1115
    %v1132 = vmul.f32 %v1115, %v1131
    %v1133 = vsub.f32 1.0, %v1132
    %v1134 = vmul.f32 %v1131, %v1133
    %v1135 = vadd.f32 %v1131, %v1134
    %vm1136 = vweird.f32 %v1115
    %vm1137 = vweird.f32 %v1131
    %vm1138 = vmor %vm1136, %vm1137
    %v1139 = vsel %vm1138, %v1131, %v1135
    %v1140 = vand.u32 2147483647, %v1115
    %vm1141 = vcmp.eq.f32.partialorder %v1140, 8.507059e+37
    %v1142 = vand.u32 %v1115, 2147483648
    %v1143 = vor.u32 1.1754944e-38, %v1142
    %v1144 = vsel %vm1141, %v1143, %v1139
    %v1145 = vmul.f32 %v1101, %v1144
    %1148 = vrot.lane.b32.xlu0 %v1130, 80
    %v1149 = vpop.permute.xlu0 %1148
    %1150 = vrot.lane.b32.xlu0 %v1145, 80
    %v1151 = vpop.permute.xlu0 %1150
    %1152 = vrot.lane.b32.xlu0 %v895, 88
    %v1153 = vpop.permute.xlu0 %1152
    %1154 = vrot.lane.b32.xlu0 %v898, 88
    %v1155 = vpop.permute.xlu0 %1154
    %v1158 = vsel %vm183, %v1149, 0
    %v1160 = vsel %vm183, %v1151, 0
    %1162 = vmatpush.msra.mxu0 0.0
    %1163 = vmatpush.msra.mxu0 0.0
    %1164 = vmatpush.msra.mxu0 0.0
    %1165 = vmatpush.msra.mxu0 0.0
    %1166 = vmatpush.msra.mxu0 0.0
    %1167 = vmatpush.msra.mxu0 0.0
    %1168 = vmatpush.msra.mxu0 0.0
    %1169 = vmatpush.msra.mxu0 0.0
    %1170 = vmatpush.msra.mxu0 0.0
    %1171 = vmatpush.msra.mxu0 0.0
    %1172 = vmatpush.msra.mxu0 0.0
    %1173 = vmatpush.msra.mxu0 0.0
    %1174 = vmatpush.msra.mxu0 0.0
    %1175 = vmatpush.msra.mxu0 0.0
    %1176 = vmatpush.msra.mxu0 %v1155
    %1177 = vmatpush.msra.mxu0 %v1153
    %1178 = vmatmul.f32.gmra.mxu0 %v1158
    %v1179 = vpop.f32.mrf.mxu0
    %v1180 = vadd.f32 0.0, %v1179
    %1181 = vmatmul.f32.gmra.mxu0 %v1160
    %v1182 = vpop.f32.mrf.mxu0
    %v1183 = vadd.f32 0.0, %v1182
    %1184 = vdwg.mxu0
    %1185 = vrot.lane.b32.xlu0 %v850, 112
    %v1186 = vpop.permute.xlu0 %1185
    %1187 = vrot.lane.b32.xlu0 %v853, 112
    %v1188 = vpop.permute.xlu0 %1187
    %1189 = vrot.lane.b32.xlu0 %v895, 112
    %v1190 = vpop.permute.xlu0 %1189
    %1191 = vrot.lane.b32.xlu0 %v898, 112
    %v1192 = vpop.permute.xlu0 %1191
    %v1193 = vsel %vm120, %v1186, 0
    %v1195 = vsel %vm120, %v1188, 0
    %v1197 = vsel %vm120, %v1190, 0
    %v1199 = vsel %vm120, %v1192, 0
    %1201 = vmatpush.xpose.msra.mxu0 0.0
    %1202 = vmatpush.xpose.msra.mxu0 0.0
    %1203 = vmatpush.xpose.msra.mxu0 0.0
    %1204 = vmatpush.xpose.msra.mxu0 0.0
    %1205 = vmatpush.xpose.msra.mxu0 0.0
    %1206 = vmatpush.xpose.msra.mxu0 0.0
    %1207 = vmatpush.xpose.msra.mxu0 0.0
    %1208 = vmatpush.xpose.msra.mxu0 0.0
    %1209 = vmatpush.xpose.msra.mxu0 0.0
    %1210 = vmatpush.xpose.msra.mxu0 0.0
    %1211 = vmatpush.xpose.msra.mxu0 0.0
    %1212 = vmatpush.xpose.msra.mxu0 0.0
    %1213 = vmatpush.xpose.msra.mxu0 0.0
    %1214 = vmatpush.xpose.msra.mxu0 0.0
    %1215 = vmatpush.xpose.msra.mxu0 %v1199
    %1216 = vmatpush.xpose.msra.mxu0 %v1197
    %1217 = vmatmul.f32.gmra.mxu0 %v1193
    %v1218 = vpop.f32.mrf.mxu0
    %v1219 = vadd.f32 0.0, %v1218
    %1220 = vmatmul.f32.gmra.mxu0 %v1195
    %v1221 = vpop.f32.mrf.mxu0
    %v1222 = vadd.f32 0.0, %v1221
    %1223 = vdwg.mxu0
    %1226 = vrot.lane.b32.xlu0 %v1219, 48
    %v1227 = vpop.permute.xlu0 %1226
    %1228 = vrot.lane.b32.xlu0 %v1222, 48
    %v1229 = vpop.permute.xlu0 %1228
    %v1232 = vsel %vm71, %v1227, -1000000.0
    %v1233 = vsel %vm72, %v1229, -1000000.0
    %v1234 = vsel %vm945, %v1232, -inf
    %1235 = vmax.xlane.f32.xlu0 %v1234
    %v1236 = vpop.xlane.xlu0 %1235
    %v1237 = vsel %vm945, %v1233, -inf
    %1238 = vmax.xlane.f32.xlu0 %v1237
    %v1239 = vpop.xlane.xlu0 %1238
    %v1240 = vsub.f32 %v1232, %v1236
    %v1241 = vsub.f32 %v1233, %v1239
    %v1242 = vmul.f32 %v1240, 1.442695
    %v1243 = vpow.pop %v1242
    %v1244 = vmul.f32 %v1241, 1.442695
    %v1245 = vpow.pop %v1244
    %1248 = vrot.lane.b32.xlu0 %v1243, 80
    %v1249 = vpop.permute.xlu0 %1248
    %1250 = vrot.lane.b32.xlu0 %v1245, 80
    %v1251 = vpop.permute.xlu0 %1250
    %v1254 = vsel %vm183, %v1249, 0.0
    %1255 = vadd.xlane.f32.xlu0 %v1254
    %v1256 = vpop.xlane.xlu0 %1255
    %v1257 = vsel %vm183, %v1251, 0.0
    %1258 = vadd.xlane.f32.xlu0 %v1257
    %v1259 = vpop.xlane.xlu0 %1258
    %v1260 = vrcp.pop %v1256
    %v1261 = vmul.f32 %v1256, %v1260
    %v1262 = vsub.f32 1.0, %v1261
    %v1263 = vmul.f32 %v1260, %v1262
    %v1264 = vadd.f32 %v1260, %v1263
    %vm1265 = vweird.f32 %v1256
    %vm1266 = vweird.f32 %v1260
    %vm1267 = vmor %vm1265, %vm1266
    %v1268 = vsel %vm1267, %v1260, %v1264
    %v1269 = vand.u32 2147483647, %v1256
    %vm1270 = vcmp.eq.f32.partialorder %v1269, 8.507059e+37
    %v1271 = vand.u32 %v1256, 2147483648
    %v1272 = vor.u32 1.1754944e-38, %v1271
    %v1273 = vsel %vm1270, %v1272, %v1268
    %v1274 = vmul.f32 %v1243, %v1273
    %v1275 = vrcp.pop %v1259
    %v1276 = vmul.f32 %v1259, %v1275
    %v1277 = vsub.f32 1.0, %v1276
    %v1278 = vmul.f32 %v1275, %v1277
    %v1279 = vadd.f32 %v1275, %v1278
    %vm1280 = vweird.f32 %v1259
    %vm1281 = vweird.f32 %v1275
    %vm1282 = vmor %vm1280, %vm1281
    %v1283 = vsel %vm1282, %v1275, %v1279
    %v1284 = vand.u32 2147483647, %v1259
    %vm1285 = vcmp.eq.f32.partialorder %v1284, 8.507059e+37
    %v1286 = vand.u32 %v1259, 2147483648
    %v1287 = vor.u32 1.1754944e-38, %v1286
    %v1288 = vsel %vm1285, %v1287, %v1283
    %v1289 = vmul.f32 %v1245, %v1288
    %1292 = vrot.lane.b32.xlu0 %v1274, 80
    %v1293 = vpop.permute.xlu0 %1292
    %1294 = vrot.lane.b32.xlu0 %v1289, 80
    %v1295 = vpop.permute.xlu0 %1294
    %1296 = vrot.lane.b32.xlu0 %v895, 80
    %v1297 = vpop.permute.xlu0 %1296
    %1298 = vrot.lane.b32.xlu0 %v898, 80
    %v1299 = vpop.permute.xlu0 %1298
    %v1302 = vsel %vm183, %v1293, 0
    %v1304 = vsel %vm183, %v1295, 0
    %1306 = vmatpush.msra.mxu0 0.0
    %1307 = vmatpush.msra.mxu0 0.0
    %1308 = vmatpush.msra.mxu0 0.0
    %1309 = vmatpush.msra.mxu0 0.0
    %1310 = vmatpush.msra.mxu0 0.0
    %1311 = vmatpush.msra.mxu0 0.0
    %1312 = vmatpush.msra.mxu0 0.0
    %1313 = vmatpush.msra.mxu0 0.0
    %1314 = vmatpush.msra.mxu0 0.0
    %1315 = vmatpush.msra.mxu0 0.0
    %1316 = vmatpush.msra.mxu0 0.0
    %1317 = vmatpush.msra.mxu0 0.0
    %1318 = vmatpush.msra.mxu0 0.0
    %1319 = vmatpush.msra.mxu0 0.0
    %1320 = vmatpush.msra.mxu0 %v1299
    %1321 = vmatpush.msra.mxu0 %v1297
    %1322 = vmatmul.f32.gmra.mxu0 %v1302
    %v1323 = vpop.f32.mrf.mxu0
    %v1324 = vadd.f32 0.0, %v1323
    %1325 = vmatmul.f32.gmra.mxu0 %v1304
    %v1326 = vpop.f32.mrf.mxu0
    %v1327 = vadd.f32 0.0, %v1326
    %1328 = vdwg.mxu0
    %1329 = vrot.lane.b32.xlu0 %v850, 104
    %v1330 = vpop.permute.xlu0 %1329
    %1331 = vrot.lane.b32.xlu0 %v853, 104
    %v1332 = vpop.permute.xlu0 %1331
    %1333 = vrot.lane.b32.xlu0 %v895, 104
    %v1334 = vpop.permute.xlu0 %1333
    %1335 = vrot.lane.b32.xlu0 %v898, 104
    %v1336 = vpop.permute.xlu0 %1335
    %v1337 = vsel %vm120, %v1330, 0
    %v1339 = vsel %vm120, %v1332, 0
    %v1341 = vsel %vm120, %v1334, 0
    %v1343 = vsel %vm120, %v1336, 0
    %1345 = vmatpush.xpose.msra.mxu0 0.0
    %1346 = vmatpush.xpose.msra.mxu0 0.0
    %1347 = vmatpush.xpose.msra.mxu0 0.0
    %1348 = vmatpush.xpose.msra.mxu0 0.0
    %1349 = vmatpush.xpose.msra.mxu0 0.0
    %1350 = vmatpush.xpose.msra.mxu0 0.0
    %1351 = vmatpush.xpose.msra.mxu0 0.0
    %1352 = vmatpush.xpose.msra.mxu0 0.0
    %1353 = vmatpush.xpose.msra.mxu0 0.0
    %1354 = vmatpush.xpose.msra.mxu0 0.0
    %1355 = vmatpush.xpose.msra.mxu0 0.0
    %1356 = vmatpush.xpose.msra.mxu0 0.0
    %1357 = vmatpush.xpose.msra.mxu0 0.0
    %1358 = vmatpush.xpose.msra.mxu0 0.0
    %1359 = vmatpush.xpose.msra.mxu0 %v1343
    %1360 = vmatpush.xpose.msra.mxu0 %v1341
    %1361 = vmatmul.f32.gmra.mxu0 %v1337
    %v1362 = vpop.f32.mrf.mxu0
    %v1363 = vadd.f32 0.0, %v1362
    %1364 = vmatmul.f32.gmra.mxu0 %v1339
    %v1365 = vpop.f32.mrf.mxu0
    %v1366 = vadd.f32 0.0, %v1365
    %1367 = vdwg.mxu0
    %1370 = vrot.lane.b32.xlu0 %v1363, 48
    %v1371 = vpop.permute.xlu0 %1370
    %1372 = vrot.lane.b32.xlu0 %v1366, 48
    %v1373 = vpop.permute.xlu0 %1372
    %v1376 = vsel %vm71, %v1371, -1000000.0
    %v1377 = vsel %vm72, %v1373, -1000000.0
    %v1378 = vsel %vm945, %v1376, -inf
    %1379 = vmax.xlane.f32.xlu0 %v1378
    %v1380 = vpop.xlane.xlu0 %1379
    %v1381 = vsel %vm945, %v1377, -inf
    %1382 = vmax.xlane.f32.xlu0 %v1381
    %v1383 = vpop.xlane.xlu0 %1382
    %v1384 = vsub.f32 %v1376, %v1380
    %v1385 = vsub.f32 %v1377, %v1383
    %v1386 = vmul.f32 %v1384, 1.442695
    %v1387 = vpow.pop %v1386
    %v1388 = vmul.f32 %v1385, 1.442695
    %v1389 = vpow.pop %v1388
    %1392 = vrot.lane.b32.xlu0 %v1387, 80
    %v1393 = vpop.permute.xlu0 %1392
    %1394 = vrot.lane.b32.xlu0 %v1389, 80
    %v1395 = vpop.permute.xlu0 %1394
    %v1398 = vsel %vm183, %v1393, 0.0
    %1399 = vadd.xlane.f32.xlu0 %v1398
    %v1400 = vpop.xlane.xlu0 %1399
    %v1401 = vsel %vm183, %v1395, 0.0
    %1402 = vadd.xlane.f32.xlu0 %v1401
    %v1403 = vpop.xlane.xlu0 %1402
    %v1404 = vrcp.pop %v1400
    %v1405 = vmul.f32 %v1400, %v1404
    %v1406 = vsub.f32 1.0, %v1405
    %v1407 = vmul.f32 %v1404, %v1406
    %v1408 = vadd.f32 %v1404, %v1407
    %vm1409 = vweird.f32 %v1400
    %vm1410 = vweird.f32 %v1404
    %vm1411 = vmor %vm1409, %vm1410
    %v1412 = vsel %vm1411, %v1404, %v1408
    %v1413 = vand.u32 2147483647, %v1400
    %vm1414 = vcmp.eq.f32.partialorder %v1413, 8.507059e+37
    %v1415 = vand.u32 %v1400, 2147483648
    %v1416 = vor.u32 1.1754944e-38, %v1415
    %v1417 = vsel %vm1414, %v1416, %v1412
    %v1418 = vmul.f32 %v1387, %v1417
    %v1419 = vrcp.pop %v1403
    %v1420 = vmul.f32 %v1403, %v1419
    %v1421 = vsub.f32 1.0, %v1420
    %v1422 = vmul.f32 %v1419, %v1421
    %v1423 = vadd.f32 %v1419, %v1422
    %vm1424 = vweird.f32 %v1403
    %vm1425 = vweird.f32 %v1419
    %vm1426 = vmor %vm1424, %vm1425
    %v1427 = vsel %vm1426, %v1419, %v1423
    %v1428 = vand.u32 2147483647, %v1403
    %vm1429 = vcmp.eq.f32.partialorder %v1428, 8.507059e+37
    %v1430 = vand.u32 %v1403, 2147483648
    %v1431 = vor.u32 1.1754944e-38, %v1430
    %v1432 = vsel %vm1429, %v1431, %v1427
    %v1433 = vmul.f32 %v1389, %v1432
    %1436 = vrot.lane.b32.xlu0 %v1418, 80
    %v1437 = vpop.permute.xlu0 %1436
    %1438 = vrot.lane.b32.xlu0 %v1433, 80
    %v1439 = vpop.permute.xlu0 %1438
    %1440 = vrot.lane.b32.xlu0 %v895, 72
    %v1441 = vpop.permute.xlu0 %1440
    %1442 = vrot.lane.b32.xlu0 %v898, 72
    %v1443 = vpop.permute.xlu0 %1442
    %v1446 = vsel %vm183, %v1437, 0
    %v1448 = vsel %vm183, %v1439, 0
    %1450 = vmatpush.msra.mxu0 0.0
    %1451 = vmatpush.msra.mxu0 0.0
    %1452 = vmatpush.msra.mxu0 0.0
    %1453 = vmatpush.msra.mxu0 0.0
    %1454 = vmatpush.msra.mxu0 0.0
    %1455 = vmatpush.msra.mxu0 0.0
    %1456 = vmatpush.msra.mxu0 0.0
    %1457 = vmatpush.msra.mxu0 0.0
    %1458 = vmatpush.msra.mxu0 0.0
    %1459 = vmatpush.msra.mxu0 0.0
    %1460 = vmatpush.msra.mxu0 0.0
    %1461 = vmatpush.msra.mxu0 0.0
    %1462 = vmatpush.msra.mxu0 0.0
    %1463 = vmatpush.msra.mxu0 0.0
    %1464 = vmatpush.msra.mxu0 %v1443
    %1465 = vmatpush.msra.mxu0 %v1441
    %1466 = vmatmul.f32.gmra.mxu0 %v1446
    %v1467 = vpop.f32.mrf.mxu0
    %v1468 = vadd.f32 0.0, %v1467
    %1469 = vmatmul.f32.gmra.mxu0 %v1448
    %v1470 = vpop.f32.mrf.mxu0
    %v1471 = vadd.f32 0.0, %v1470
    %1472 = vdwg.mxu0
    %1475 = vrot.lane.b32.xlu0 %v1180, 8
    %v1476 = vpop.permute.xlu0 %1475
    %1477 = vrot.lane.b32.xlu0 %v1183, 8
    %v1478 = vpop.permute.xlu0 %1477
    %1483 = vrot.lane.b32.xlu0 %v1324, 16
    %v1484 = vpop.permute.xlu0 %1483
    %1485 = vrot.lane.b32.xlu0 %v1327, 16
    %v1486 = vpop.permute.xlu0 %1485
    %1491 = vrot.lane.b32.xlu0 %v1468, 24
    %v1492 = vpop.permute.xlu0 %1491
    %1493 = vrot.lane.b32.xlu0 %v1471, 24
    %v1494 = vpop.permute.xlu0 %1493
    %v1497 = vsel %vm120, %v1036, %v1476
    %v1498 = vsel %vm120, %v1039, %v1478
    %v1499 = vsel %vm183, %v1497, %v1484
    %v1500 = vsel %vm183, %v1498, %v1486
    %v1501 = vsel %vm719, %v1499, %v1492
    %v1502 = vsel %vm719, %v1500, %v1494
    %1503 = vrot.lane.b32.xlu0 %v76, 32
    %v1504 = vpop.permute.xlu0 %1503
    %1505 = vrot.lane.b32.xlu0 %v78, 32
    %v1506 = vpop.permute.xlu0 %1505
    %1507 = vrot.lane.b32.xlu0 %v80, 32
    %v1508 = vpop.permute.xlu0 %1507
    %1509 = vrot.lane.b32.xlu0 %v82, 32
    %v1510 = vpop.permute.xlu0 %1509
    %v1516 = vsel %vm84, %v1501, 0
    %v1519 = vsel %vm84, %v1502, 0
    %1521 = vmatpush.msra.mxu0 0.0
    %1522 = vmatpush.msra.mxu0 0.0
    %1523 = vmatpush.msra.mxu0 0.0
    %1524 = vmatpush.msra.mxu0 0.0
    %1525 = vmatpush.msra.mxu0 0.0
    %1526 = vmatpush.msra.mxu0 0.0
    %1527 = vmatpush.msra.mxu0 0.0
    %1528 = vmatpush.msra.mxu0 0.0
    %1529 = vmatpush.msra.mxu0 0.0
    %1530 = vmatpush.msra.mxu0 0.0
    %1531 = vmatpush.msra.mxu0 0.0
    %1532 = vmatpush.msra.mxu0 0.0
    %1533 = vmatpush.msra.mxu0 %v1510
    %1534 = vmatpush.msra.mxu0 %v1508
    %1535 = vmatpush.msra.mxu0 %v1506
    %1536 = vmatpush.msra.mxu0 %v1504
    %1537 = vmatmul.f32.gmra.mxu0 %v1516
    %v1538 = vpop.f32.mrf.mxu0
    %v1539 = vadd.f32 0.0, %v1538
    %1540 = vmatmul.f32.gmra.mxu0 %v1519
    %v1541 = vpop.f32.mrf.mxu0
    %v1542 = vadd.f32 0.0, %v1541
    %1543 = vdwg.mxu0
    %v1544 = vadd.f32 %v824, %v1539
    %v1545 = vadd.f32 %v825, %v1542
    %v1546 = vsel %vm84, %v1544, 0.0
    %1547 = vadd.xlane.f32.xlu0 %v1546
    %v1548 = vpop.xlane.xlu0 %1547
    %v1549 = vsel %vm84, %v1545, 0.0
    %1550 = vadd.xlane.f32.xlu0 %v1549
    %v1551 = vpop.xlane.xlu0 %1550
    %v1552 = vmul.f32 %v1548, %v781
    %v1553 = vmul.f32 %v1551, %v781
    %v1554 = vsub.f32 %v1544, %v1552
    %v1555 = vsub.f32 %v1545, %v1553
    %v1556 = vmul.f32 %v1554, %v1554
    %v1557 = vmul.f32 %v1555, %v1555
    %v1558 = vsel %vm84, %v1556, 0.0
    %1559 = vadd.xlane.f32.xlu0 %v1558
    %v1560 = vpop.xlane.xlu0 %1559
    %v1561 = vsel %vm84, %v1557, 0.0
    %1562 = vadd.xlane.f32.xlu0 %v1561
    %v1563 = vpop.xlane.xlu0 %1562
    %v1564 = vmul.f32 %v1560, %v781
    %v1565 = vmul.f32 %v1563, %v781
    %v1566 = vadd.f32 %v1564, 1e-05
    %v1567 = vadd.f32 %v1565, 1e-05
    %v1568 = vrsqrt.pop %v1566
    %v1569 = vmul.f32 %v1568, %v1566
    %v1570 = vmul.f32 %v1569, %v1568
    %v1571 = vmul.f32 0.5, %v1570
    %v1572 = vsub.f32 1.5, %v1571
    %v1573 = vmul.f32 %v1568, %v1572
    %vm1574 = vweird.f32 %v1566
    %vm1575 = vweird.f32 %v1568
    %vm1576 = vmor %vm1574, %vm1575
    %v1577 = vsel %vm1576, %v1568, %v1573
    %v1578 = vrsqrt.pop %v1567
    %v1579 = vmul.f32 %v1578, %v1567
    %v1580 = vmul.f32 %v1579, %v1578
    %v1581 = vmul.f32 0.5, %v1580
    %v1582 = vsub.f32 1.5, %v1581
    %v1583 = vmul.f32 %v1578, %v1582
    %vm1584 = vweird.f32 %v1567
    %vm1585 = vweird.f32 %v1578
    %vm1586 = vmor %vm1584, %vm1585
    %v1587 = vsel %vm1586, %v1578, %v1583
    %v1588 = vmul.f32 %v1554, %v1577
    %v1589 = vmul.f32 %v1555, %v1587
    %v1590 = vperm.slane %v83, 2
    %v1591 = vmul.f32 %v1588, %v1590
    %v1592 = vmul.f32 %v1589, %v1590
    %v1593 = vperm.slane %v83, 3
    %v1594 = vadd.f32 %v1591, %v1593
    %v1595 = vadd.f32 %v1592, %v1593
    %v1596 = vld [vmem:[%s3] sm:$0xff]
    %v1597 = vld [vmem:[%s3 + $0x8] sm:$0xff]
    %v1598 = vld [vmem:[%s3 + $0x10] sm:$0xff]
    %v1599 = vld [vmem:[%s3 + $0x18] sm:$0xff]
    %v1600 = vperm.slane %v83, 7
    %v1602 = vsel %vm84, %v1594, 0
    %v1605 = vsel %vm84, %v1595, 0
    %1607 = vmatpush.msra.mxu0 0.0
    %1608 = vmatpush.msra.mxu0 0.0
    %1609 = vmatpush.msra.mxu0 0.0
    %1610 = vmatpush.msra.mxu0 0.0
    %1611 = vmatpush.msra.mxu0 0.0
    %1612 = vmatpush.msra.mxu0 0.0
    %1613 = vmatpush.msra.mxu0 0.0
    %1614 = vmatpush.msra.mxu0 0.0
    %1615 = vmatpush.msra.mxu0 0.0
    %1616 = vmatpush.msra.mxu0 0.0
    %1617 = vmatpush.msra.mxu0 0.0
    %1618 = vmatpush.msra.mxu0 0.0
    %1619 = vmatpush.msra.mxu0 %v1599
    %1620 = vmatpush.msra.mxu0 %v1598
    %1621 = vmatpush.msra.mxu0 %v1597
    %1622 = vmatpush.msra.mxu0 %v1596
    %1623 = vmatmul.f32.gmra.mxu0 %v1602
    %v1624 = vpop.f32.mrf.mxu0
    %v1625 = vadd.f32 %v1600, %v1624
    %1626 = vmatmul.f32.gmra.mxu0 %v1605
    %v1627 = vpop.f32.mrf.mxu0
    %v1628 = vadd.f32 %v1600, %v1627
    %1629 = vdwg.mxu0
    %v1630 = vmax.f32 %v1625, 0.0
    %v1631 = vmax.f32 %v1628, 0.0
    %v1632 = vld [vmem:[%s4] sm:$0xff]
    %v1633 = vld [vmem:[%s4 + $0x8] sm:$0xff]
    %v1634 = vld [vmem:[%s4 + $0x10] sm:$0xff]
    %v1635 = vld [vmem:[%s4 + $0x18] sm:$0xff]
    %v1636 = vld [vmem:[%s4 + $0x20] sm:$0xff]
    %v1637 = vld [vmem:[%s4 + $0x28] sm:$0xff]
    %v1638 = vld [vmem:[%s4 + $0x30] sm:$0xff]
    %v1639 = vld [vmem:[%s4 + $0x38] sm:$0xff]
    %v1640 = vperm.slane %v83, 6
    %vm1641 = vcmask 523264
    %v1643 = vsel %vm1641, %v1630, 0
    %v1646 = vsel %vm1641, %v1631, 0
    %1648 = vmatpush.msra.mxu0 0.0
    %1649 = vmatpush.msra.mxu0 0.0
    %1650 = vmatpush.msra.mxu0 0.0
    %1651 = vmatpush.msra.mxu0 0.0
    %1652 = vmatpush.msra.mxu0 0.0
    %1653 = vmatpush.msra.mxu0 0.0
    %1654 = vmatpush.msra.mxu0 0.0
    %1655 = vmatpush.msra.mxu0 0.0
    %1656 = vmatpush.msra.mxu0 %v1639
    %1657 = vmatpush.msra.mxu0 %v1638
    %1658 = vmatpush.msra.mxu0 %v1637
    %1659 = vmatpush.msra.mxu0 %v1636
    %1660 = vmatpush.msra.mxu0 %v1635
    %1661 = vmatpush.msra.mxu0 %v1634
    %1662 = vmatpush.msra.mxu0 %v1633
    %1663 = vmatpush.msra.mxu0 %v1632
    %1664 = vmatmul.f32.gmra.mxu0 %v1643
    %v1665 = vpop.f32.mrf.mxu0
    %v1666 = vadd.f32 %v1640, %v1665
    %1667 = vmatmul.f32.gmra.mxu0 %v1646
    %v1668 = vpop.f32.mrf.mxu0
    %v1669 = vadd.f32 %v1640, %v1668
    %1670 = vdwg.mxu0
    %v1671 = vadd.f32 %v1594, %v1666
    %v1672 = vadd.f32 %v1595, %v1669
    %v1673 = vsel %vm84, %v1671, 0.0
    %1674 = vadd.xlane.f32.xlu0 %v1673
    %v1675 = vpop.xlane.xlu0 %1674
    %v1676 = vsel %vm84, %v1672, 0.0
    %1677 = vadd.xlane.f32.xlu0 %v1676
    %v1678 = vpop.xlane.xlu0 %1677
    %v1679 = vmul.f32 %v1675, %v781
    %v1680 = vmul.f32 %v1678, %v781
    %v1681 = vsub.f32 %v1671, %v1679
    %v1682 = vsub.f32 %v1672, %v1680
    %v1683 = vmul.f32 %v1681, %v1681
    %v1684 = vmul.f32 %v1682, %v1682
    %v1685 = vsel %vm84, %v1683, 0.0
    %1686 = vadd.xlane.f32.xlu0 %v1685
    %v1687 = vpop.xlane.xlu0 %1686
    %v1688 = vsel %vm84, %v1684, 0.0
    %1689 = vadd.xlane.f32.xlu0 %v1688
    %v1690 = vpop.xlane.xlu0 %1689
    %v1691 = vmul.f32 %v1687, %v781
    %v1692 = vmul.f32 %v1690, %v781
    %v1693 = vadd.f32 %v1691, 1e-05
    %v1694 = vadd.f32 %v1692, 1e-05
    %v1695 = vrsqrt.pop %v1693
    %v1696 = vmul.f32 %v1695, %v1693
    %v1697 = vmul.f32 %v1696, %v1695
    %v1698 = vmul.f32 0.5, %v1697
    %v1699 = vsub.f32 1.5, %v1698
    %v1700 = vmul.f32 %v1695, %v1699
    %vm1701 = vweird.f32 %v1693
    %vm1702 = vweird.f32 %v1695
    %vm1703 = vmor %vm1701, %vm1702
    %v1704 = vsel %vm1703, %v1695, %v1700
    %v1705 = vrsqrt.pop %v1694
    %v1706 = vmul.f32 %v1705, %v1694
    %v1707 = vmul.f32 %v1706, %v1705
    %v1708 = vmul.f32 0.5, %v1707
    %v1709 = vsub.f32 1.5, %v1708
    %v1710 = vmul.f32 %v1705, %v1709
    %vm1711 = vweird.f32 %v1694
    %vm1712 = vweird.f32 %v1705
    %vm1713 = vmor %vm1711, %vm1712
    %v1714 = vsel %vm1713, %v1705, %v1710
    %v1715 = vmul.f32 %v1681, %v1704
    %v1716 = vmul.f32 %v1682, %v1714
    %v1717 = vperm.slane %v83, 4
    %v1718 = vmul.f32 %v1715, %v1717
    %v1719 = vmul.f32 %v1716, %v1717
    %v1720 = vperm.slane %v83, 5
    %v1721 = vadd.f32 %v1718, %v1720
    %v1722 = vadd.f32 %v1719, %v1720
    %1723 = vst.msk [vmem:[#allocation8] sm:$0xff] %vm84, %v1721
    %1724 = vst.msk [vmem:[#allocation8 + $0x8] sm:$0xff] %vm84, %v1722
    // Predicated region
    $region38: #{tpu_custom_call.1} parent=1 // pred_check
      _
    $region39: #{tpu_custom_call.1} parent=1 // pred_check_branch
      %1726 = sbr.rel (0) target = $region41
    $region40: #{tpu_custom_call.1} parent=1 // pred_region
      %1728 = vsyncadd [#allocation4], 0
      %s1729 = sshll.u32 [#allocation8], 4
      %s1730 = int_to_ptr.vmem [resolvable:$true] %s1729
      %s1731 = sshll.u32 %s6, 4
      %s1732 = int_to_ptr.hbm [resolvable:$true] %s1731
      %1737 = dma.vmem_to_hbm [thread:$0]  %s1730, 256, %s1732, [#allocation4], 128, 128, 8
    $region41: #{tpu_custom_call.1} parent=1 // pred_fallthru
      _
    // Predicated region
    $region42: #{tpu_custom_call.1} parent=1 // pred_check
      _
    $region43: #{tpu_custom_call.1} parent=1 // pred_check_branch
      %1739 = sbr.rel (0) target = $region45
    $region44: #{tpu_custom_call.1} parent=1 // pred_region
      %1741 = dma.done [#allocation4], 256
    $region45: #{tpu_custom_call.1} parent=1 // pred_fallthru
      _
    %1742 = vsyncpa [#allocation3], 1
    %1743 = vsyncpa [#allocation6], 1
    %1744 = vsyncpa [#allocation4], 1

</llo_original>
